<compile_context>
chip_gen: v5e
topology: v5e:2x2
jax: 0.10.0
libtpu: 0.0.40
codegen_flags: <defaults>
</compile_context>

<pallas_src>
import functools

import jax
import jax.numpy as jnp
from jax import lax
from jax.experimental import pallas as pl
from jax.experimental.pallas import tpu as pltpu

LEAKY_SLOPE = 0.01   # nn.LeakyReLU default
LN_EPS = 1e-5        # nn.LayerNorm default
_HI = lax.Precision.HIGHEST


def gcn_layer_kernel(x_ref, e_ref, uvw_ref, weu_ref, ln_ref,
                     xo_ref, eo_ref, acc_ref,
                     *, tile_i, tile_j, n_chunks, h_real, mxu_dtype):
    """One grid step = (batch element b, row tile i) of the (N, N, H) edge tensor.

    Blocks:
      x_ref   (1, tile_i, Hp)    io  raw node rows (residual only)
      e_ref   (1, tile_i, N, Hp) io  edge features, row tile
      uvw_ref (1, N, 4*Hp)       f32 [Un(x)/2 | Ve(x)/2 + beu/4 | Ve(x)/2 | Vn(x)/2]
      weu_ref (Hp, Hp)           mxu U_e weight pre-scaled by 1/4
      ln_ref  (4, Hp)            f32 [lne_w, lne_b, lnn_w, lnn_b] pre-scaled by 1/2
      xo_ref  (1, tile_i, Hp)    io
      eo_ref  (1, tile_i, N, Hp) io
      acc_ref (tile_i, Hp)       f32 scratch: sum_j tanh(e_tmp/2) * Vx_j
    """
    f32 = jnp.float32
    Hp = x_ref.shape[2]
    inv_h = 1.0 / float(h_real)
    n_pad = Hp - h_real

    row0 = pl.multiple_of(pl.program_id(1) * tile_i, tile_i)

    rows = uvw_ref[0, pl.ds(row0, tile_i), :]          # (tile_i, 4Hp) f32
    ux = rows[:, 0:Hp]
    ve_i = rows[:, Hp:2 * Hp]                          # includes beu/4

    lnp = ln_ref[...]                                  # (4, Hp) f32, pre-scaled by 1/2
    lne_w, lne_b, lnn_w, lnn_b = lnp[0:1], lnp[1:2], lnp[2:3], lnp[3:4]

    def layer_norm(v, w, b):
        # Centered LayerNorm over the real H lanes. Padded lanes of v are zero, so each
        # contributes (-mu)^2 to sum(d*d); subtract that back out with a per-row scalar.
        mu = jnp.sum(v, axis=-1, keepdims=True) * inv_h
        d = v - mu
        ss = jnp.sum(d * d, axis=-1, keepdims=True)
        if n_pad:
            ss = ss - float(n_pad) * (mu * mu)
        return d * lax.rsqrt(ss * inv_h + LN_EPS) * w + b

    def leaky(v):
        return jnp.where(v >= 0, v, LEAKY_SLOPE * v)

    # sigmoid(z) = 0.5*tanh(z/2) + 0.5. The "+0.5" part of the gated sum is the constant
    # 0.5 * sum_j Vx_j, added once per row tile instead of once per edge element.
    svx = jnp.sum(uvw_ref[0, :, 3 * Hp:4 * Hp], axis=0, keepdims=True) * 0.5   # (1, Hp)

    acc_ref[...] = jnp.zeros_like(acc_ref)

    def process(j0):
        e_blk = e_ref[0, :, pl.ds(j0, tile_j), :]                      # (tile_i, tj, Hp) io
        cols = uvw_ref[0, pl.ds(j0, tile_j), :]                        # (tj, 4Hp) f32
        ve_j = cols[:, 2 * Hp:3 * Hp]
        vx_j = cols[:, 3 * Hp:4 * Hp]

        e_mm = e_blk.reshape(tile_i * tile_j, Hp).astype(mxu_dtype)
        ue = jnp.dot(e_mm, weu_ref[...], preferred_element_type=f32)   # weight holds the /4
        e_tmp = ue.reshape(tile_i, tile_j, Hp) + ve_i[:, None, :] + ve_j[None, :, :]

        # Node aggregation partial sum.
        t = jnp.tanh(e_tmp * 0.5)
        acc_ref[...] += jnp.sum(t * vx_j[None, :, :], axis=1)

        # Edge output: e/2 + LayerNorm(LeakyReLU(e_tmp))/2 (the /2 lives in lne_w/lne_b).
        e_out = layer_norm(leaky(e_tmp), lne_w, lne_b)
        eo_ref[0, :, pl.ds(j0, tile_j), :] = (
            e_blk.astype(f32) * 0.5 + e_out).astype(eo_ref.dtype)

    if n_chunks == 1:
        process(0)
    else:
        @pl.loop(0, n_chunks)
        def _(c):
            process(pl.multiple_of(c * tile_j, tile_j))

    # Node output: x/2 + LayerNorm(LeakyReLU(Ux + sum_j sigmoid(e_tmp)*Vx_j))/2.
    x_tmp = ux + acc_ref[...] * 0.5 + svx
    x_out = layer_norm(leaky(x_tmp), lnn_w, lnn_b)
    xo_ref[0] = (x_ref[0].astype(f32) * 0.5 + x_out).astype(xo_ref.dtype)


def _pick_tiles(B, N, Hp, io_itemsize, row_align, vmem_cap):
    """Row tile (HBM<->VMEM granule) and j-chunk (f32 intermediate granule)."""
    divisors = [d for d in range(1, N + 1) if N % d == 0]
    aligned = [d for d in divisors if d == N or d % row_align == 0]

    row_cands = aligned
    if B == 1:  # keep >= 2 parallel grid steps so both v7x TensorCores get work
        capped = [d for d in aligned if d <= max(N // 2, 1)]
        if capped:
            row_cands = capped

    io_budget = int(vmem_cap * 0.45)
    tile_i = min(row_cands)
    for t in sorted(row_cands, reverse=True):
        if 4 * t * N * Hp * io_itemsize <= io_budget:   # e in+out, double-buffered
            tile_i = t
            break

    chunk_budget = int(vmem_cap * 0.20)
    tile_j = min(aligned)
    for t in sorted(aligned, reverse=True):
        if 5 * tile_i * t * Hp * 4 <= chunk_budget:     # f32 temporaries in the j-chunk body
            tile_j = t
            break
    return tile_i, tile_j


def residual_gated_gcn_layer(x, e, params, *, tile_i=None, tile_j=None,
                             compute_dtype=None, mxu_dtype=None, output_dtype=None):
    """x: (B, N, H), e: (B, N, N, H). Returns (x_new, e_new).

    compute_dtype: on-HBM dtype for x/e inside the kernel (bf16 halves edge traffic; the
                   residual x/2, e/2 is then also read at bf16 precision).
    mxu_dtype:     matmul operand dtype (default: bf16 iff compute dtype is bf16, else f32).
    output_dtype:  dtype of the returned arrays (default: input dtypes).
    """
    B, N, H = x.shape
    assert e.shape == (B, N, N, H), (x.shape, e.shape)
    (weu, beu, wev, bev, wnu, bnu, wnv, bnv,
     lne_w, lne_b, lnn_w, lnn_b) = params

    f32 = jnp.float32
    Hp = ((H + 127) // 128) * 128
    io_dtype = jnp.dtype(compute_dtype) if compute_dtype is not None else jnp.dtype(x.dtype)
    if mxu_dtype is None:
        mxu_dtype = jnp.bfloat16 if io_dtype == jnp.dtype(jnp.bfloat16) else f32
    mxu_dtype = jnp.dtype(mxu_dtype)
    io_itemsize = io_dtype.itemsize

    def pad_lane(a):
        pad = Hp - a.shape[-1]
        if pad:
            a = jnp.pad(a, [(0, 0)] * (a.ndim - 1) + [(0, pad)])
        return a

    def pad_mat(w):
        return jnp.pad(w, ((0, Hp - w.shape[0]), (0, Hp - w.shape[1])))

    # ---- node projections hoisted out of the kernel (identical for every grid step) ----
    xf = x.astype(f32)
    ux = (jnp.dot(xf, wnu.astype(f32), precision=_HI) + bnu.reshape(-1)) * 0.5
    ve = (jnp.dot(xf, wev.astype(f32), precision=_HI) + bev.reshape(-1)) * 0.5
    vx = (jnp.dot(xf, wnv.astype(f32), precision=_HI) + bnv.reshape(-1)) * 0.5
    uvw = jnp.concatenate(
        [pad_lane(ux),
         pad_lane(ve + 0.25 * beu.reshape(-1)),   # edge bias beu/4 folded into the row term
         pad_lane(ve),
         pad_lane(vx)], axis=-1).astype(f32)       # (B, N, 4*Hp)

    # ---- constant folding: the /4 on Ue and the post-LN /2 live inside the weights ----
    weu_s = pad_mat(jnp.asarray(weu, f32) * 0.25).astype(mxu_dtype)
    ln_p = (jnp.stack([pad_lane(lne_w.reshape(-1)), pad_lane(lne_b.reshape(-1)),
                       pad_lane(lnn_w.reshape(-1)), pad_lane(lnn_b.reshape(-1))],
                      axis=0) * 0.5).astype(f32)                                 # (4, Hp)

    # ---- I/O tensors: skip the extra HBM pass when no pad / cast is actually needed ----
    # TODO(synk): for H << 128 a lane-folded (B, N, N*H) layout would avoid moving ~Hp/H x
    # padding bytes per real element; kept simple here (padding zeros are numerically inert).
    same_layout = (Hp == H)
    x_in = x if (same_layout and x.dtype == io_dtype) else pad_lane(x.astype(io_dtype))
    e_in = e if (same_layout and e.dtype == io_dtype) else pad_lane(e.astype(io_dtype))

    # ---- generation-aware tiling / VMEM budget ----
    try:
        vmem_cap = int(getattr(pltpu.get_tpu_info(), "vmem_capacity_bytes", 64 << 20))
    except Exception:  # not on TPU / interpret mode
        vmem_cap = 64 << 20
    vmem_cap = min(max(vmem_cap, 32 << 20), 128 << 20)

    row_align = {4: 8, 2: 16, 1: 32}.get(io_itemsize, 8)
    auto_i, auto_j = _pick_tiles(B, N, Hp, io_itemsize, row_align, vmem_cap)
    if tile_i is None:
        tile_i = auto_i
    if tile_j is None:
        tile_j = auto_j
    assert N % tile_i == 0 and (tile_i == N or tile_i % row_align == 0), (N, tile_i, row_align)
    assert N % tile_j == 0 and (tile_j == N or tile_j % row_align == 0), (N, tile_j, row_align)
    n_chunks = N // tile_j

    kernel = functools.partial(
        gcn_layer_kernel, tile_i=tile_i, tile_j=tile_j, n_chunks=n_chunks,
        h_real=H, mxu_dtype=mxu_dtype)

    grid_spec = pltpu.PrefetchScalarGridSpec(
        num_scalar_prefetch=0,
        grid=(B, N // tile_i),
        in_specs=[
            pl.BlockSpec((1, tile_i, Hp), lambda b, i: (b, i, 0)),          # x rows (residual)
            pl.BlockSpec((1, tile_i, N, Hp), lambda b, i: (b, i, 0, 0)),    # e row tile
            pl.BlockSpec((1, N, 4 * Hp), lambda b, i: (b, 0, 0)),           # hoisted projections
            pl.BlockSpec((Hp, Hp), lambda b, i: (0, 0)),                    # U_e weight (/4 folded)
            pl.BlockSpec((4, Hp), lambda b, i: (0, 0)),                     # LN params (/2 folded)
        ],
        out_specs=[
            pl.BlockSpec((1, tile_i, Hp), lambda b, i: (b, i, 0)),
            pl.BlockSpec((1, tile_i, N, Hp), lambda b, i: (b, i, 0, 0)),
        ],
        scratch_shapes=[pltpu.VMEM((tile_i, Hp), jnp.float32)],
    )

    out_shape = (
        jax.ShapeDtypeStruct((B, N, Hp), io_dtype),
        jax.ShapeDtypeStruct((B, N, N, Hp), io_dtype),
    )

    # VMEM footprint estimate -> explicit scoped limit (<= physical capacity).
    vmem_est = (4 * tile_i * N * Hp * io_itemsize        # e in/out, double buffered
                + 4 * tile_i * Hp * io_itemsize          # x in / x out
                + 2 * N * 4 * Hp * 4                     # hoisted projections
                + 2 * Hp * Hp * mxu_dtype.itemsize       # U_e weight
                + tile_i * Hp * 4                        # accumulator scratch
                + 8 * tile_i * tile_j * Hp * 4           # f32 temporaries per j-chunk
                + (4 << 20))
    vmem_limit = int(min(max(vmem_est, 32 << 20), vmem_cap))

    cost = pl.CostEstimate(
        flops=int(2 * B * N * N * Hp * Hp + 16 * B * N * N * Hp),
        transcendentals=int(B * N * N * Hp),
        bytes_accessed=int((2 * B * N * N * Hp + 4 * B * N * Hp) * io_itemsize
                           + B * N * 4 * Hp * 4),
    )

    x_new, e_new = pl.pallas_call(
        kernel,
        out_shape=out_shape,
        grid_spec=grid_spec,
        compiler_params=pltpu.CompilerParams(
            dimension_semantics=("parallel", "parallel"),
            vmem_limit_bytes=vmem_limit,
            # let XLA fuse the pad/cast producers of x and e into the call's operand reads
            allow_input_fusion=[True, True, False, False, False],
        ),
        cost_estimate=cost,
    )(x_in, e_in, uvw, weu_s, ln_p)

    out_x_dtype = jnp.dtype(output_dtype) if output_dtype is not None else x.dtype
    out_e_dtype = jnp.dtype(output_dtype) if output_dtype is not None else e.dtype
    if not same_layout:
        x_new = x_new[..., :H]
        e_new = e_new[..., :H]
    if x_new.dtype != out_x_dtype:
        x_new = x_new.astype(out_x_dtype)
    if e_new.dtype != out_e_dtype:
        e_new = e_new.astype(out_e_dtype)
    return x_new, e_new


# ---------------------------- pure-JAX reference (for checking) -------------------------
def reference_forward(x, e, params):
    (weu, beu, wev, bev, wnu, bnu, wnv, bnv,
     lne_w, lne_b, lnn_w, lnn_b) = params
    ve = (jnp.dot(x, wev, precision=_HI) + bev) * 0.5
    ue = (jnp.dot(e, weu, precision=_HI) + beu) * 0.5
    e_tmp = ue * 0.5 + ve[:, :, None, :] + ve[:, None, :, :]
    gate = jax.nn.sigmoid(e_tmp)
    ux = (jnp.dot(x, wnu, precision=_HI) + bnu) * 0.5
    vx = (jnp.dot(x, wnv, precision=_HI) + bnv) * 0.5
    x_tmp = ux + jnp.sum(gate * vx[:, None, :, :], axis=2)

    def ln(v, w, b):
        mu = jnp.mean(v, axis=-1, keepdims=True)
        var = jnp.mean((v - mu) ** 2, axis=-1, keepdims=True)
        return (v - mu) / jnp.sqrt(var + LN_EPS) * w + b

    lrelu = lambda v: jnp.where(v >= 0, v, LEAKY_SLOPE * v)
    e_new = e * 0.5 + ln(lrelu(e_tmp), lne_w.reshape(-1), lne_b.reshape(-1)) * 0.5
    x_new = x * 0.5 + ln(lrelu(x_tmp), lnn_w.reshape(-1), lnn_b.reshape(-1)) * 0.5
    return x_new, e_new


def make_params(key, hidden_dim):
    ks = jax.random.split(key, 8)
    scale = 1.0 / jnp.sqrt(hidden_dim)

    def lin(kw, kb):
        # weights already in (in, out) layout used by the kernel (PyTorch W transposed)
        w = jax.random.uniform(kw, (hidden_dim, hidden_dim), jnp.float32, -scale, scale)
        b = jax.random.uniform(kb, (1, hidden_dim), jnp.float32, -scale, scale)
        return w, b

    weu, beu = lin(ks[0], ks[1])
    wev, bev = lin(ks[2], ks[3])
    wnu, bnu = lin(ks[4], ks[5])
    wnv, bnv = lin(ks[6], ks[7])
    lne_w = jnp.ones((1, hidden_dim), jnp.float32)
    lne_b = jnp.zeros((1, hidden_dim), jnp.float32)
    lnn_w = jnp.ones((1, hidden_dim), jnp.float32)
    lnn_b = jnp.zeros((1, hidden_dim), jnp.float32)
    return (weu, beu, wev, bev, wnu, bnu, wnv, bnv, lne_w, lne_b, lnn_w, lnn_b)


if __name__ == "__main__":
    B, N, H = 2, 16, 32
    key = jax.random.PRNGKey(0)
    kx, ke, kp = jax.random.split(key, 3)

    x = jax.random.normal(kx, (B, N, H), jnp.float32)
    e = jax.random.normal(ke, (B, N, N, H), jnp.float32)
    params = make_params(kp, H)

    x_gold, e_gold = reference_forward(x, e, params)

    # f32 path, row-tiled grid (tile_i=8 -> grid (2, 2)).
    run_f32 = jax.jit(functools.partial(residual_gated_gcn_layer, tile_i=8))
    x1, e1 = jax.block_until_ready(run_f32(x, e, params))
    assert x1.shape == (B, N, H) and e1.shape == (B, N, N, H)
    assert x1.dtype == x.dtype and e1.dtype == e.dtype
    assert jnp.allclose(x1, x_gold, atol=2e-3, rtol=2e-3)
    assert jnp.allclose(e1, e_gold, atol=2e-3, rtol=2e-3)

    # f32 path exercising the in-kernel j-chunk loop (tile_j=8 -> 2 chunks per row tile).
    run_chunk = jax.jit(functools.partial(residual_gated_gcn_layer, tile_i=8, tile_j=8))
    x2, e2 = jax.block_until_ready(run_chunk(x, e, params))
    assert jnp.allclose(x2, x_gold, atol=2e-3, rtol=2e-3)
    assert jnp.allclose(e2, e_gold, atol=2e-3, rtol=2e-3)

    # bf16 I/O + bf16 MXU path (halves edge-tensor HBM traffic); auto tile pick (16-aligned).
    run_bf16 = jax.jit(functools.partial(residual_gated_gcn_layer,
                                         compute_dtype=jnp.bfloat16))
    x3, e3 = jax.block_until_ready(run_bf16(x, e, params))
    assert jnp.allclose(x3, x_gold, atol=5e-2, rtol=5e-2)
    assert jnp.allclose(e3, e_gold, atol=5e-2, rtol=5e-2)

    print("KERNEL_OK")
</pallas_src>

<mosaic_0001>
module attributes {stable_mosaic.version = 11 : i64} {
  func.func @gcn_layer_kernel(%arg0: i32, %arg1: i32, %arg2: memref<1x8x128xf32, #tpu.memory_space<vmem>>, %arg3: memref<1x8x16x128xf32, #tpu.memory_space<vmem>>, %arg4: memref<1x16x512xf32, #tpu.memory_space<vmem>>, %arg5: memref<128x128xf32, #tpu.memory_space<vmem>>, %arg6: memref<4x128xf32, #tpu.memory_space<vmem>>, %arg7: memref<1x8x128xf32, #tpu.memory_space<vmem>>, %arg8: memref<1x8x16x128xf32, #tpu.memory_space<vmem>>, %arg9: memref<8x128xf32, #tpu.memory_space<vmem>>) attributes {dimension_semantics = [#tpu.dimension_semantics<parallel>, #tpu.dimension_semantics<parallel>], iteration_bounds = array<i64: 2, 2>, scalar_prefetch = 0 : i64, scratch_operands = 1 : i64, tpu.core_type = #tpu.core_type<tc>, window_params = [{transform_indices = @transform_0, window_bounds = array<i64: 1, 8, 128>}, {transform_indices = @transform_1, window_bounds = array<i64: 1, 8, 16, 128>}, {transform_indices = @transform_2, window_bounds = array<i64: 1, 16, 512>}, {pipeline_mode = #tpu.pipeline_mode<synchronous>, transform_indices = @transform_3, window_bounds = array<i64: 128, 128>}, {pipeline_mode = #tpu.pipeline_mode<synchronous>, transform_indices = @transform_4, window_bounds = array<i64: 4, 128>}, {transform_indices = @transform_5, window_bounds = array<i64: 1, 8, 128>}, {transform_indices = @transform_6, window_bounds = array<i64: 1, 8, 16, 128>}]} {
    %c8_i32 = arith.constant 8 : i32
    %0 = arith.muli %arg1, %c8_i32 : i32
    %1 = tpu.assume_multiple %0, 8 : i32
    %c0 = arith.constant 0 : index
    %2 = arith.index_cast %1 : i32 to index
    %c0_0 = arith.constant 0 : index
    %3 = vector.load %arg4[%c0, %2, %c0_0] : memref<1x16x512xf32, #tpu.memory_space<vmem>>, vector<1x8x512xf32>
    %4 = vector.shape_cast %3 : vector<1x8x512xf32> to vector<8x512xf32>
    %5 = vector.extract_strided_slice %4 {offsets = [0, 0], sizes = [8, 128], strides = [1, 1]} : vector<8x512xf32> to vector<8x128xf32>
    %6 = vector.extract_strided_slice %4 {offsets = [0, 128], sizes = [8, 128], strides = [1, 1]} : vector<8x512xf32> to vector<8x128xf32>
    %c0_1 = arith.constant 0 : index
    %c0_2 = arith.constant 0 : index
    %7 = vector.load %arg6[%c0_1, %c0_2] : memref<4x128xf32, #tpu.memory_space<vmem>>, vector<4x128xf32>
    %8 = vector.extract_strided_slice %7 {offsets = [0, 0], sizes = [1, 128], strides = [1, 1]} : vector<4x128xf32> to vector<1x128xf32>
    %9 = vector.extract_strided_slice %7 {offsets = [1, 0], sizes = [1, 128], strides = [1, 1]} : vector<4x128xf32> to vector<1x128xf32>
    %10 = vector.extract_strided_slice %7 {offsets = [2, 0], sizes = [1, 128], strides = [1, 1]} : vector<4x128xf32> to vector<1x128xf32>
    %11 = vector.extract_strided_slice %7 {offsets = [3, 0], sizes = [1, 128], strides = [1, 1]} : vector<4x128xf32> to vector<1x128xf32>
    %c0_3 = arith.constant 0 : index
    %c0_4 = arith.constant 0 : index
    %c384 = arith.constant 384 : index
    %12 = vector.load %arg4[%c0_3, %c0_4, %c384] : memref<1x16x512xf32, #tpu.memory_space<vmem>>, vector<1x16x128xf32>
    %13 = vector.shape_cast %12 : vector<1x16x128xf32> to vector<16x128xf32>
    %cst = arith.constant dense<0.000000e+00> : vector<128xf32>
    %14 = vector.multi_reduction <add>, %13, %cst [0] : vector<16x128xf32> to vector<128xf32>
    %15 = vector.shape_cast %14 : vector<128xf32> to vector<1x128xf32>
    %cst_5 = arith.constant 5.000000e-01 : f32
    %16 = vector.broadcast %cst_5 : f32 to vector<1x128xf32>
    %17 = arith.mulf %15, %16 : vector<1x128xf32>
    %cst_6 = arith.constant 0.000000e+00 : f32
    %18 = vector.broadcast %cst_6 : f32 to vector<8x128xf32>
    %c0_7 = arith.constant 0 : index
    %c0_8 = arith.constant 0 : index
    %19 = vector.load %arg9[%c0_7, %c0_8] : memref<8x128xf32, #tpu.memory_space<vmem>>, vector<8x128xf32>
    tpu.vector_store %arg9[%c0_7, %c0_8], %18 {strides = array<i32>} : memref<8x128xf32, #tpu.memory_space<vmem>>, vector<8x128xf32>,
    %c0_9 = arith.constant 0 : index
    %c0_10 = arith.constant 0 : index
    %c0_11 = arith.constant 0 : index
    %c0_12 = arith.constant 0 : index
    %20 = vector.load %arg3[%c0_9, %c0_10, %c0_11, %c0_12] : memref<1x8x16x128xf32, #tpu.memory_space<vmem>>, vector<1x8x16x128xf32>
    %21 = vector.shape_cast %20 : vector<1x8x16x128xf32> to vector<8x16x128xf32>
    %c0_13 = arith.constant 0 : index
    %c0_14 = arith.constant 0 : index
    %c0_15 = arith.constant 0 : index
    %22 = vector.load %arg4[%c0_13, %c0_14, %c0_15] : memref<1x16x512xf32, #tpu.memory_space<vmem>>, vector<1x16x512xf32>
    %23 = vector.shape_cast %22 : vector<1x16x512xf32> to vector<16x512xf32>
    %24 = vector.extract_strided_slice %23 {offsets = [0, 256], sizes = [16, 128], strides = [1, 1]} : vector<16x512xf32> to vector<16x128xf32>
    %25 = vector.extract_strided_slice %23 {offsets = [0, 384], sizes = [16, 128], strides = [1, 1]} : vector<16x512xf32> to vector<16x128xf32>
    %26 = vector.shape_cast %21 : vector<8x16x128xf32> to vector<128x128xf32>
    %c0_16 = arith.constant 0 : index
    %c0_17 = arith.constant 0 : index
    %27 = vector.load %arg5[%c0_16, %c0_17] : memref<128x128xf32, #tpu.memory_space<vmem>>, vector<128x128xf32>
    %cst_18 = arith.constant dense<0.000000e+00> : vector<128x128xf32>
    %28 = tpu.matmul %26, %27, %cst_18 {dimension_numbers = #tpu.dot_dimension_numbers<[1], [0], [0], [1], [0, 0, 1, 1], [], []>} : vector<128x128xf32>, vector<128x128xf32>, vector<128x128xf32> -> vector<128x128xf32>
    %29 = vector.shape_cast %28 : vector<128x128xf32> to vector<8x16x128xf32>
    %30 = vector.shape_cast %6 : vector<8x128xf32> to vector<8x1x128xf32>
    %31 = vector.broadcast %30 : vector<8x1x128xf32> to vector<8x16x128xf32>
    %32 = arith.addf %29, %31 : vector<8x16x128xf32>
    %33 = vector.shape_cast %24 : vector<16x128xf32> to vector<1x16x128xf32>
    %34 = vector.broadcast %33 : vector<1x16x128xf32> to vector<8x16x128xf32>
    %35 = arith.addf %32, %34 : vector<8x16x128xf32>
    %cst_19 = arith.constant 5.000000e-01 : f32
    %36 = vector.broadcast %cst_19 : f32 to vector<8x16x128xf32>
    %37 = arith.mulf %35, %36 : vector<8x16x128xf32>
    %38 = math.tanh %37 : vector<8x16x128xf32>
    %c0_20 = arith.constant 0 : index
    %c0_21 = arith.constant 0 : index
    %39 = vector.load %arg9[%c0_20, %c0_21] : memref<8x128xf32, #tpu.memory_space<vmem>>, vector<8x128xf32>
    %40 = vector.shape_cast %25 : vector<16x128xf32> to vector<1x16x128xf32>
    %41 = vector.broadcast %40 : vector<1x16x128xf32> to vector<8x16x128xf32>
    %42 = arith.mulf %38, %41 : vector<8x16x128xf32>
    %cst_22 = arith.constant dense<0.000000e+00> : vector<8x128xf32>
    %43 = vector.multi_reduction <add>, %42, %cst_22 [1] : vector<8x16x128xf32> to vector<8x128xf32>
    %44 = arith.addf %39, %43 : vector<8x128xf32>
    %c0_23 = arith.constant 0 : index
    %c0_24 = arith.constant 0 : index
    %45 = vector.load %arg9[%c0_23, %c0_24] : memref<8x128xf32, #tpu.memory_space<vmem>>, vector<8x128xf32>
    tpu.vector_store %arg9[%c0_23, %c0_24], %44 {strides = array<i32>} : memref<8x128xf32, #tpu.memory_space<vmem>>, vector<8x128xf32>,
    %cst_25 = arith.constant 0.000000e+00 : f32
    %46 = vector.broadcast %cst_25 : f32 to vector<8x16x128xf32>
    %47 = arith.cmpf oge, %35, %46 : vector<8x16x128xf32>
    %cst_26 = arith.constant 0.00999999977 : f32
    %48 = vector.broadcast %cst_26 : f32 to vector<8x16x128xf32>
    %49 = arith.mulf %48, %35 : vector<8x16x128xf32>
    %50 = arith.select %47, %35, %49 : vector<8x16x128xi1>, vector<8x16x128xf32>
    %cst_27 = arith.constant dense<0.000000e+00> : vector<8x16xf32>
    %51 = vector.multi_reduction <add>, %50, %cst_27 [2] : vector<8x16x128xf32> to vector<8x16xf32>
    %52 = vector.shape_cast %51 : vector<8x16xf32> to vector<8x16x1xf32>
    %cst_28 = arith.constant 3.125000e-02 : f32
    %53 = vector.broadcast %cst_28 : f32 to vector<8x16x1xf32>
    %54 = arith.mulf %52, %53 : vector<8x16x1xf32>
    %55 = vector.broadcast %54 : vector<8x16x1xf32> to vector<8x16x128xf32>
    %56 = arith.subf %50, %55 : vector<8x16x128xf32>
    %57 = arith.mulf %56, %56 : vector<8x16x128xf32>
    %cst_29 = arith.constant dense<0.000000e+00> : vector<8x16xf32>
    %58 = vector.multi_reduction <add>, %57, %cst_29 [2] : vector<8x16x128xf32> to vector<8x16xf32>
    %59 = vector.shape_cast %58 : vector<8x16xf32> to vector<8x16x1xf32>
    %60 = arith.mulf %54, %54 : vector<8x16x1xf32>
    %cst_30 = arith.constant 9.600000e+01 : f32
    %61 = vector.broadcast %cst_30 : f32 to vector<8x16x1xf32>
    %62 = arith.mulf %61, %60 : vector<8x16x1xf32>
    %63 = arith.subf %59, %62 : vector<8x16x1xf32>
    %cst_31 = arith.constant 3.125000e-02 : f32
    %64 = vector.broadcast %cst_31 : f32 to vector<8x16x1xf32>
    %65 = arith.mulf %63, %64 : vector<8x16x1xf32>
    %cst_32 = arith.constant 9.99999974E-6 : f32
    %66 = vector.broadcast %cst_32 : f32 to vector<8x16x1xf32>
    %67 = arith.addf %65, %66 : vector<8x16x1xf32>
    %68 = math.rsqrt %67 : vector<8x16x1xf32>
    %69 = vector.broadcast %68 : vector<8x16x1xf32> to vector<8x16x128xf32>
    %70 = arith.mulf %56, %69 : vector<8x16x128xf32>
    %71 = vector.shape_cast %8 : vector<1x128xf32> to vector<1x1x128xf32>
    %72 = vector.broadcast %71 : vector<1x1x128xf32> to vector<8x16x128xf32>
    %73 = arith.mulf %70, %72 : vector<8x16x128xf32>
    %74 = vector.shape_cast %9 : vector<1x128xf32> to vector<1x1x128xf32>
    %75 = vector.broadcast %74 : vector<1x1x128xf32> to vector<8x16x128xf32>
    %76 = arith.addf %73, %75 : vector<8x16x128xf32>
    %cst_33 = arith.constant 5.000000e-01 : f32
    %77 = vector.broadcast %cst_33 : f32 to vector<8x16x128xf32>
    %78 = arith.mulf %21, %77 : vector<8x16x128xf32>
    %79 = arith.addf %78, %76 : vector<8x16x128xf32>
    %c0_34 = arith.constant 0 : index
    %c0_35 = arith.constant 0 : index
    %c0_36 = arith.constant 0 : index
    %c0_37 = arith.constant 0 : index
    %80 = vector.load %arg8[%c0_34, %c0_35, %c0_36, %c0_37] : memref<1x8x16x128xf32, #tpu.memory_space<vmem>>, vector<1x8x16x128xf32>
    %81 = vector.shape_cast %80 : vector<1x8x16x128xf32> to vector<8x16x128xf32>
    %82 = vector.shape_cast %79 : vector<8x16x128xf32> to vector<1x8x16x128xf32>
    tpu.vector_store %arg8[%c0_34, %c0_35, %c0_36, %c0_37], %82 {strides = array<i32>} : memref<1x8x16x128xf32, #tpu.memory_space<vmem>>, vector<1x8x16x128xf32>,
    %c0_38 = arith.constant 0 : index
    %c0_39 = arith.constant 0 : index
    %83 = vector.load %arg9[%c0_38, %c0_39] : memref<8x128xf32, #tpu.memory_space<vmem>>, vector<8x128xf32>
    %cst_40 = arith.constant 5.000000e-01 : f32
    %84 = vector.broadcast %cst_40 : f32 to vector<8x128xf32>
    %85 = arith.mulf %83, %84 : vector<8x128xf32>
    %86 = arith.addf %5, %85 : vector<8x128xf32>
    %87 = vector.broadcast %17 : vector<1x128xf32> to vector<8x128xf32>
    %88 = arith.addf %86, %87 : vector<8x128xf32>
    %cst_41 = arith.constant 0.000000e+00 : f32
    %89 = vector.broadcast %cst_41 : f32 to vector<8x128xf32>
    %90 = arith.cmpf oge, %88, %89 : vector<8x128xf32>
    %cst_42 = arith.constant 0.00999999977 : f32
    %91 = vector.broadcast %cst_42 : f32 to vector<8x128xf32>
    %92 = arith.mulf %91, %88 : vector<8x128xf32>
    %93 = arith.select %90, %88, %92 : vector<8x128xi1>, vector<8x128xf32>
    %cst_43 = arith.constant dense<0.000000e+00> : vector<8xf32>
    %94 = vector.multi_reduction <add>, %93, %cst_43 [1] : vector<8x128xf32> to vector<8xf32>
    %95 = vector.shape_cast %94 : vector<8xf32> to vector<8x1xf32>
    %cst_44 = arith.constant 3.125000e-02 : f32
    %96 = vector.broadcast %cst_44 : f32 to vector<8x1xf32>
    %97 = arith.mulf %95, %96 : vector<8x1xf32>
    %98 = vector.broadcast %97 : vector<8x1xf32> to vector<8x128xf32>
    %99 = arith.subf %93, %98 : vector<8x128xf32>
    %100 = arith.mulf %99, %99 : vector<8x128xf32>
    %cst_45 = arith.constant dense<0.000000e+00> : vector<8xf32>
    %101 = vector.multi_reduction <add>, %100, %cst_45 [1] : vector<8x128xf32> to vector<8xf32>
    %102 = vector.shape_cast %101 : vector<8xf32> to vector<8x1xf32>
    %103 = arith.mulf %97, %97 : vector<8x1xf32>
    %cst_46 = arith.constant 9.600000e+01 : f32
    %104 = vector.broadcast %cst_46 : f32 to vector<8x1xf32>
    %105 = arith.mulf %104, %103 : vector<8x1xf32>
    %106 = arith.subf %102, %105 : vector<8x1xf32>
    %cst_47 = arith.constant 3.125000e-02 : f32
    %107 = vector.broadcast %cst_47 : f32 to vector<8x1xf32>
    %108 = arith.mulf %106, %107 : vector<8x1xf32>
    %cst_48 = arith.constant 9.99999974E-6 : f32
    %109 = vector.broadcast %cst_48 : f32 to vector<8x1xf32>
    %110 = arith.addf %108, %109 : vector<8x1xf32>
    %111 = math.rsqrt %110 : vector<8x1xf32>
    %112 = vector.broadcast %111 : vector<8x1xf32> to vector<8x128xf32>
    %113 = arith.mulf %99, %112 : vector<8x128xf32>
    %114 = vector.broadcast %10 : vector<1x128xf32> to vector<8x128xf32>
    %115 = arith.mulf %113, %114 : vector<8x128xf32>
    %116 = vector.broadcast %11 : vector<1x128xf32> to vector<8x128xf32>
    %117 = arith.addf %115, %116 : vector<8x128xf32>
    %c0_49 = arith.constant 0 : index
    %c0_50 = arith.constant 0 : index
    %c0_51 = arith.constant 0 : index
    %118 = vector.load %arg2[%c0_49, %c0_50, %c0_51] : memref<1x8x128xf32, #tpu.memory_space<vmem>>, vector<1x8x128xf32>
    %119 = vector.shape_cast %118 : vector<1x8x128xf32> to vector<8x128xf32>
    %cst_52 = arith.constant 5.000000e-01 : f32
    %120 = vector.broadcast %cst_52 : f32 to vector<8x128xf32>
    %121 = arith.mulf %119, %120 : vector<8x128xf32>
    %122 = arith.addf %121, %117 : vector<8x128xf32>
    %c0_53 = arith.constant 0 : index
    %c0_54 = arith.constant 0 : index
    %c0_55 = arith.constant 0 : index
    %123 = vector.load %arg7[%c0_53, %c0_54, %c0_55] : memref<1x8x128xf32, #tpu.memory_space<vmem>>, vector<1x8x128xf32>
    %124 = vector.shape_cast %123 : vector<1x8x128xf32> to vector<8x128xf32>
    %125 = vector.shape_cast %122 : vector<8x128xf32> to vector<1x8x128xf32>
    tpu.vector_store %arg7[%c0_53, %c0_54, %c0_55], %125 {strides = array<i32>} : memref<1x8x128xf32, #tpu.memory_space<vmem>>, vector<1x8x128xf32>,
    return
  }
  func.func @transform_0(%arg0: i32, %arg1: i32) -> (i32, i32, i32) {
    %c0_i32 = arith.constant 0 : i32
    %c0_i32_0 = arith.constant 0 : i32
    return %arg0, %arg1, %c0_i32 : i32, i32, i32
  }
  func.func @transform_1(%arg0: i32, %arg1: i32) -> (i32, i32, i32, i32) {
    %c0_i32 = arith.constant 0 : i32
    %c0_i32_0 = arith.constant 0 : i32
    %c0_i32_1 = arith.constant 0 : i32
    return %arg0, %arg1, %c0_i32, %c0_i32_0 : i32, i32, i32, i32
  }
  func.func @transform_2(%arg0: i32, %arg1: i32) -> (i32, i32, i32) {
    %c0_i32 = arith.constant 0 : i32
    %c0_i32_0 = arith.constant 0 : i32
    %c0_i32_1 = arith.constant 0 : i32
    return %arg0, %c0_i32, %c0_i32_0 : i32, i32, i32
  }
  func.func @transform_3(%arg0: i32, %arg1: i32) -> (i32, i32) {
    %c0_i32 = arith.constant 0 : i32
    %c0_i32_0 = arith.constant 0 : i32
    %c0_i32_1 = arith.constant 0 : i32
    return %c0_i32, %c0_i32_0 : i32, i32
  }
  func.func @transform_4(%arg0: i32, %arg1: i32) -> (i32, i32) {
    %c0_i32 = arith.constant 0 : i32
    %c0_i32_0 = arith.constant 0 : i32
    %c0_i32_1 = arith.constant 0 : i32
    return %c0_i32, %c0_i32_0 : i32, i32
  }
  func.func @transform_5(%arg0: i32, %arg1: i32) -> (i32, i32, i32) {
    %c0_i32 = arith.constant 0 : i32
    %c0_i32_0 = arith.constant 0 : i32
    return %arg0, %arg1, %c0_i32 : i32, i32, i32
  }
  func.func @transform_6(%arg0: i32, %arg1: i32) -> (i32, i32, i32, i32) {
    %c0_i32 = arith.constant 0 : i32
    %c0_i32_0 = arith.constant 0 : i32
    %c0_i32_1 = arith.constant 0 : i32
    return %arg0, %arg1, %c0_i32, %c0_i32_0 : i32, i32, i32, i32
  }
}

</mosaic_0001>

<llo_original>
// kernel: residual_gated_gcn_layer.2
$region0: #{residual_gated_gcn_layer.2}
  #allocation0 [shape = 'u32[]', space=smem, size = 0x4, offset = 0x4, fixed_abs, tag = 'smem constant byte address 0x4 - core index']
  #allocation1 [shape = 'u32[72,128]{1,0:T(1,128)}', space=vmem, size = 0x9000, scoped, tag = 'internal scratch']
  #allocation2 [shape = 'f32[8,128]{1,0:T(8,128)}', space=vmem, size = 0x1000, scoped, tag = 'scratch operand']
  #allocation3 [shape = 'u32[2048]{0}', space=vmem, size = 0x2000, scoped, tag = 'scoped memory for residual_gated_gcn_layer.2']
  #allocation4 [shape = 'u32[2048]{0}', space=vmem, size = 0x2000, scoped, tag = 'scoped memory for residual_gated_gcn_layer.2']
  #allocation5 [shape = 'u32[2048]{0}', space=vmem, size = 0x2000, scoped, tag = 'scoped memory for residual_gated_gcn_layer.2']
  #allocation6 [shape = 'u32[2048]{0}', space=vmem, size = 0x2000, scoped, tag = 'scoped memory for residual_gated_gcn_layer.2']
  #allocation7 [shape = 'u32[2048]{0}', space=vmem, size = 0x2000, scoped, tag = 'scoped memory for residual_gated_gcn_layer.2']
  #allocation8 [shape = 'u32[2048]{0}', space=vmem, size = 0x2000, scoped, tag = 'scoped memory for residual_gated_gcn_layer.2']
  #allocation9 [shape = 'u32[2048]{0}', space=vmem, size = 0x2000, scoped, tag = 'scoped memory for residual_gated_gcn_layer.2']
  #allocation10 [shape = 'u32[2048]{0}', space=vmem, size = 0x2000, scoped, tag = 'scoped memory for residual_gated_gcn_layer.2']
  #allocation11 [shape = 'u32[2048]{0}', space=vmem, size = 0x2000, scoped, tag = 'scoped memory for residual_gated_gcn_layer.2']
  #allocation12 [shape = 'u32[2048]{0}', space=vmem, size = 0x2000, scoped, tag = 'scoped memory for residual_gated_gcn_layer.2']
  %s0 = inlined_call_operand.vmem [shape: f32[2,16,512], index: 0, kind: input, shape index: {}]
  %s1 = inlined_call_operand.vmem [shape: f32[128,128], index: 1, kind: input, shape index: {}]
  %s2 = inlined_call_operand.vmem [shape: f32[4,128], index: 2, kind: input, shape index: {}]
  %s3 = inlined_call_operand.vmem [shape: f32[2,16,16,32], index: 3, kind: input, shape index: {}]
  %s4 = inlined_call_operand.<no memory space> [shape: f32[], index: 4, kind: input, shape index: {}]
  %s5 = inlined_call_operand.vmem [shape: f32[2,16,32], index: 5, kind: input, shape index: {}]
  %s6 = inlined_call_operand.hbm [shape: f32[2,16,128], index: 6, kind: output, shape index: {0}]
  %s7 = inlined_call_operand.hbm [shape: f32[2,16,16,128], index: 7, kind: output, shape index: {1}]
  %8 = xla_tuple %s6, %s7
  %s9 = sld [smem:[#allocation0]]
  $region61: #{residual_gated_gcn_layer.2} parent=0
    _
  %s11 = ssub.s32 1, %s9
  %s12 = scalar_select 0, %s11, %s9
  %v13 = vstv %s4
  %v14 = vstv %s4
  $region1: #{residual_gated_gcn_layer.2} parent=0
    #allocation13 [shape = 'u8[8192]{0}', space=vmem, size = 0x2000, scoped, tag = 'output window, operand 0']
    #allocation14 [shape = 's32[2]{0}', space=sflag, size = 0x8, scoped, tag = 'scoped memory for residual_gated_gcn_layer.2']
    #allocation15 [shape = 'u8[131072]{0}', space=vmem, size = 0x20000, scoped, tag = 'output window, operand 1']
    #allocation16 [shape = 's32[2]{0}', space=sflag, size = 0x8, scoped, tag = 'scoped memory for residual_gated_gcn_layer.2']
    %15 = vsyncpa [#allocation14], 0
    %s16 = scalar_lea.sflag [#allocation14], 1
    %17 = vsyncpa %s16, 0
    %18 = vsyncpa [#allocation16], 0
    %s19 = scalar_lea.sflag [#allocation16], 1
    %20 = vsyncpa %s19, 0
    loop: start=0, step=1, limit=6
    $region2: #{residual_gated_gcn_layer.2} parent=1 // loop_pre_header
      _
    $region3: #{residual_gated_gcn_layer.2} parent=1 // loop_header
      %s22 = sphi 0, %s26
      %p23 = scmp.ge.s32.totalorder %s22, 6
      %s29 = sphi 0, %s41
      %s30 = sphi 0, %s37
      %s31 = sphi 0, %s29
      %s32 = sphi 0, %s30
      %s33 = sphi 0, %s31
      %s34 = sphi 0, %s32
      %s46 = sphi 0, %s48
      %s49 = sphi 0, %s46
      %s50 = sphi 0, %s49
      %s66 = sphi 0, %s50
      %s74 = sphi 0, %s76
      %s77 = sphi 0, %s74
      %s78 = sphi 0, %s77
      %s94 = sphi 0, %s78
      %s100 = sphi 0, %s102
      %s103 = sphi 0, %s100
      %s104 = sphi 0, %s103
      %s120 = sphi 0, %s104
      %s124 = sphi 0, %s124
      %s126 = sphi 0, %s124
      %s127 = sphi 0, %s126
      %s141 = sphi 0, %s127
      %s145 = sphi 0, %s145
      %s147 = sphi 0, %s145
      %s148 = sphi 0, %s147
      %s162 = sphi 0, %s148
      %s170 = sphi 0, %s172
      %s173 = sphi 0, %s170
      %s174 = sphi 0, %s173
      %s190 = sphi 0, %s174
      %s198 = sphi 0, %s200
      %s201 = sphi 0, %s198
      %s202 = sphi 0, %s201
      %s218 = sphi 0, %s202
    $region4: #{residual_gated_gcn_layer.2} parent=1 // loop_header_branch
      %25 = sbr.rel (%p23) target = $region8
    $region5: #{residual_gated_gcn_layer.2} parent=1 // loop_body
      %s27 = ssub.s32 %s22, 1
      %s28 = ssub.s32 %s22, 2
      %s35 = sadd.s32 1, %s30
      %p36 = scmp.ge.s32.totalorder %s35, 2
      %s37 = scalar_select %p36, 0, %s35
      %s38 = sadd.s32 1, %s29
      %s39 = scalar_select %p36, %s38, %s29
      %p40 = scmp.ge.s32.totalorder %s39, 2
      %s41 = scalar_select %p40, 0, %s39
      %s42 = ssub.s32 %s29, %s41
      %s43 = ssub.s32 %s30, %s37
      %s44 = sor.u32 %s42, %s43
      %p45 = scmp.eq.s32.totalorder %s44, 0
      %s47 = sadd.s32 %s46, 1
      %s48 = scalar_select %p45, %s46, %s47
      %p51 = pneg %p45
      %p52 = scmp.eq.s32.totalorder %s22, 3
      %p53 = por %p51, %p52
      %p54 = scmp.ne.s32.totalorder %s46, %s49
      %p55 = scmp.eq.s32.totalorder %s22, 0
      %p56 = por %p54, %p55
      %p57 = scmp.ne.s32.totalorder %s46, %s49
      %p58 = scmp.eq.s32.totalorder %s27, 3
      %p59 = por %p57, %p58
      %p60 = scmp.ne.s32.totalorder %s49, %s50
      %p61 = scmp.eq.s32.totalorder %s27, 0
      %p62 = por %p60, %p61
      %p63 = scmp.ne.s32.totalorder %s49, %s50
      %p64 = scmp.eq.s32.totalorder %s28, 3
      %p65 = por %p63, %p64
      %p67 = scmp.ne.s32.totalorder %s50, %s66
      %p68 = scmp.eq.s32.totalorder %s28, 0
      %p69 = por %p67, %p68
      %s70 = ssub.s32 %s29, %s41
      %s71 = ssub.s32 %s30, %s37
      %s72 = sor.u32 %s70, %s71
      %p73 = scmp.eq.s32.totalorder %s72, 0
      %s75 = sadd.s32 %s74, 1
      %s76 = scalar_select %p73, %s74, %s75
      %p79 = pneg %p73
      %p80 = scmp.eq.s32.totalorder %s22, 3
      %p81 = por %p79, %p80
      %p82 = scmp.ne.s32.totalorder %s74, %s77
      %p83 = scmp.eq.s32.totalorder %s22, 0
      %p84 = por %p82, %p83
      %p85 = scmp.ne.s32.totalorder %s74, %s77
      %p86 = scmp.eq.s32.totalorder %s27, 3
      %p87 = por %p85, %p86
      %p88 = scmp.ne.s32.totalorder %s77, %s78
      %p89 = scmp.eq.s32.totalorder %s27, 0
      %p90 = por %p88, %p89
      %p91 = scmp.ne.s32.totalorder %s77, %s78
      %p92 = scmp.eq.s32.totalorder %s28, 3
      %p93 = por %p91, %p92
      %p95 = scmp.ne.s32.totalorder %s78, %s94
      %p96 = scmp.eq.s32.totalorder %s28, 0
      %p97 = por %p95, %p96
      %s98 = ssub.s32 %s29, %s41
      %p99 = scmp.eq.s32.totalorder %s98, 0
      %s101 = sadd.s32 %s100, 1
      %s102 = scalar_select %p99, %s100, %s101
      %p105 = pneg %p99
      %p106 = scmp.eq.s32.totalorder %s22, 3
      %p107 = por %p105, %p106
      %p108 = scmp.ne.s32.totalorder %s100, %s103
      %p109 = scmp.eq.s32.totalorder %s22, 0
      %p110 = por %p108, %p109
      %p111 = scmp.ne.s32.totalorder %s100, %s103
      %p112 = scmp.eq.s32.totalorder %s27, 3
      %p113 = por %p111, %p112
      %p114 = scmp.ne.s32.totalorder %s103, %s104
      %p115 = scmp.eq.s32.totalorder %s27, 0
      %p116 = por %p114, %p115
      %p117 = scmp.ne.s32.totalorder %s103, %s104
      %p118 = scmp.eq.s32.totalorder %s28, 3
      %p119 = por %p117, %p118
      %p121 = scmp.ne.s32.totalorder %s104, %s120
      %p122 = scmp.eq.s32.totalorder %s28, 0
      %p123 = por %p121, %p122
      %s125 = sadd.s32 %s124, 1
      %p128 = scmp.eq.s32.totalorder %s22, 3
      %p129 = scmp.ne.s32.totalorder %s124, %s126
      %p130 = scmp.eq.s32.totalorder %s22, 0
      %p131 = por %p129, %p130
      %p132 = scmp.ne.s32.totalorder %s124, %s126
      %p133 = scmp.eq.s32.totalorder %s27, 3
      %p134 = por %p132, %p133
      %p135 = scmp.ne.s32.totalorder %s126, %s127
      %p136 = scmp.eq.s32.totalorder %s27, 0
      %p137 = por %p135, %p136
      %p138 = scmp.ne.s32.totalorder %s126, %s127
      %p139 = scmp.eq.s32.totalorder %s28, 3
      %p140 = por %p138, %p139
      %p142 = scmp.ne.s32.totalorder %s127, %s141
      %p143 = scmp.eq.s32.totalorder %s28, 0
      %p144 = por %p142, %p143
      %s146 = sadd.s32 %s145, 1
      %p149 = scmp.eq.s32.totalorder %s22, 3
      %p150 = scmp.ne.s32.totalorder %s145, %s147
      %p151 = scmp.eq.s32.totalorder %s22, 0
      %p152 = por %p150, %p151
      %p153 = scmp.ne.s32.totalorder %s145, %s147
      %p154 = scmp.eq.s32.totalorder %s27, 3
      %p155 = por %p153, %p154
      %p156 = scmp.ne.s32.totalorder %s147, %s148
      %p157 = scmp.eq.s32.totalorder %s27, 0
      %p158 = por %p156, %p157
      %p159 = scmp.ne.s32.totalorder %s147, %s148
      %p160 = scmp.eq.s32.totalorder %s28, 3
      %p161 = por %p159, %p160
      %p163 = scmp.ne.s32.totalorder %s148, %s162
      %p164 = scmp.eq.s32.totalorder %s28, 0
      %p165 = por %p163, %p164
      %s166 = ssub.s32 %s29, %s41
      %s167 = ssub.s32 %s30, %s37
      %s168 = sor.u32 %s166, %s167
      %p169 = scmp.eq.s32.totalorder %s168, 0
      %s171 = sadd.s32 %s170, 1
      %s172 = scalar_select %p169, %s170, %s171
      %p175 = pneg %p169
      %p176 = scmp.eq.s32.totalorder %s22, 3
      %p177 = por %p175, %p176
      %p178 = scmp.ne.s32.totalorder %s170, %s173
      %p179 = scmp.eq.s32.totalorder %s22, 0
      %p180 = por %p178, %p179
      %p181 = scmp.ne.s32.totalorder %s170, %s173
      %p182 = scmp.eq.s32.totalorder %s27, 3
      %p183 = por %p181, %p182
      %p184 = scmp.ne.s32.totalorder %s173, %s174
      %p185 = scmp.eq.s32.totalorder %s27, 0
      %p186 = por %p184, %p185
      %p187 = scmp.ne.s32.totalorder %s173, %s174
      %p188 = scmp.eq.s32.totalorder %s28, 3
      %p189 = por %p187, %p188
      %p191 = scmp.ne.s32.totalorder %s174, %s190
      %p192 = scmp.eq.s32.totalorder %s28, 0
      %p193 = por %p191, %p192
      %s194 = ssub.s32 %s29, %s41
      %s195 = ssub.s32 %s30, %s37
      %s196 = sor.u32 %s194, %s195
      %p197 = scmp.eq.s32.totalorder %s196, 0
      %s199 = sadd.s32 %s198, 1
      %s200 = scalar_select %p197, %s198, %s199
      %p203 = pneg %p197
      %p204 = scmp.eq.s32.totalorder %s22, 3
      %p205 = por %p203, %p204
      %p206 = scmp.ne.s32.totalorder %s198, %s201
      %p207 = scmp.eq.s32.totalorder %s22, 0
      %p208 = por %p206, %p207
      %p209 = scmp.ne.s32.totalorder %s198, %s201
      %p210 = scmp.eq.s32.totalorder %s27, 3
      %p211 = por %p209, %p210
      %p212 = scmp.ne.s32.totalorder %s201, %s202
      %p213 = scmp.eq.s32.totalorder %s27, 0
      %p214 = por %p212, %p213
      %p215 = scmp.ne.s32.totalorder %s201, %s202
      %p216 = scmp.eq.s32.totalorder %s28, 3
      %p217 = por %p215, %p216
      %p219 = scmp.ne.s32.totalorder %s202, %s218
      %p220 = scmp.eq.s32.totalorder %s28, 0
      %p221 = por %p219, %p220
      %p222 = scmp.le.s32.totalorder 1, %s22
      %p223 = scmp.lt.s32.totalorder %s22, 5
      %p224 = pnand %p222, %p223
      %p225 = pneg %p224
      // Predicated region
      $region9: #{residual_gated_gcn_layer.2} parent=5 // pred_check
        _
      $region10: #{residual_gated_gcn_layer.2} parent=5 // pred_check_branch
        %227 = sbr.rel (%p224) target = $region12
      $region11: #{residual_gated_gcn_layer.2} parent=5 // pred_region
        %s228 = ssub.s32 %s22, 1
        // Predicated region
        $region13: #{residual_gated_gcn_layer.2} parent=11 // pred_check
          %p229 = pneg %p137
        $region14: #{residual_gated_gcn_layer.2} parent=11 // pred_check_branch
          %231 = sbr.rel (%p229) target = $region16
        $region15: #{residual_gated_gcn_layer.2} parent=11 // pred_region
          _
        $region16: #{residual_gated_gcn_layer.2} parent=11 // pred_fallthru
          _
        // Predicated region
        $region17: #{residual_gated_gcn_layer.2} parent=11 // pred_check
          %p232 = pneg %p158
        $region18: #{residual_gated_gcn_layer.2} parent=11 // pred_check_branch
          %234 = sbr.rel (%p232) target = $region20
        $region19: #{residual_gated_gcn_layer.2} parent=11 // pred_region
          _
        $region20: #{residual_gated_gcn_layer.2} parent=11 // pred_fallthru
          _
      $region12: #{residual_gated_gcn_layer.2} parent=5 // pred_fallthru
        _
      %p235 = scmp.lt.s32.totalorder %s22, 4
      // Predicated region
      $region21: #{residual_gated_gcn_layer.2} parent=5 // pred_check
        %p236 = pneg %p235
      $region22: #{residual_gated_gcn_layer.2} parent=5 // pred_check_branch
        %238 = sbr.rel (%p236) target = $region24
      $region23: #{residual_gated_gcn_layer.2} parent=5 // pred_region
        // Predicated region
        $region25: #{residual_gated_gcn_layer.2} parent=23 // pred_check
          %p239 = pneg %p56
        $region26: #{residual_gated_gcn_layer.2} parent=23 // pred_check_branch
          %241 = sbr.rel (%p239) target = $region28
        $region27: #{residual_gated_gcn_layer.2} parent=23 // pred_region
          %p242 = scmp.lt.s32.totalorder %s29, 1
          %s243 = scalar_select %p242, %s29, 1
          %p244 = scmp.lt.s32.totalorder %s30, 1
          %s245 = scalar_select %p244, %s30, 1
          %s246 = smul.addr %s243, 2
          %s247 = sadd.s32 %s245, %s246
          %s248 = smul.addr %s247, 8
          %s249 = scalar_lea.vmem %s5, %s248
        $region28: #{residual_gated_gcn_layer.2} parent=23 // pred_fallthru
          _
        // Predicated region
        $region29: #{residual_gated_gcn_layer.2} parent=23 // pred_check
          %p250 = pneg %p84
        $region30: #{residual_gated_gcn_layer.2} parent=23 // pred_check_branch
          %252 = sbr.rel (%p250) target = $region32
        $region31: #{residual_gated_gcn_layer.2} parent=23 // pred_region
          %s253 = smul.u32 8, %s30
          %p254 = scmp.lt.s32.totalorder %s29, 1
          %s255 = scalar_select %p254, %s29, 1
          %p256 = scmp.lt.s32.totalorder %s253, 15
          %s257 = scalar_select %p256, %s253, 15
          %s258 = smul.addr %s257, 2
          %s259 = smul.addr %s255, 32
          %s260 = sadd.s32 %s258, %s259
          %s261 = smul.addr %s260, 8
          %s262 = scalar_lea.vmem %s3, %s261
          %s263 = smul.u32 8, %s30
        $region32: #{residual_gated_gcn_layer.2} parent=23 // pred_fallthru
          _
        // Predicated region
        $region33: #{residual_gated_gcn_layer.2} parent=23 // pred_check
          %p264 = pneg %p110
        $region34: #{residual_gated_gcn_layer.2} parent=23 // pred_check_branch
          %266 = sbr.rel (%p264) target = $region36
        $region35: #{residual_gated_gcn_layer.2} parent=23 // pred_region
          %p267 = scmp.lt.s32.totalorder %s29, 1
          %s268 = scalar_select %p267, %s29, 1
          %s269 = smul.addr %s268, 8
          %s270 = smul.addr %s269, 8
          %s271 = scalar_lea.vmem %s0, %s270
        $region36: #{residual_gated_gcn_layer.2} parent=23 // pred_fallthru
          _
      $region24: #{residual_gated_gcn_layer.2} parent=5 // pred_fallthru
        _
      %p272 = scmp.le.s32.totalorder 1, %s22
      %p273 = scmp.lt.s32.totalorder %s22, 5
      %p274 = pnand %p272, %p273
      %p275 = pneg %p274
      // Predicated region
      $region37: #{residual_gated_gcn_layer.2} parent=5 // pred_check
        _
      $region38: #{residual_gated_gcn_layer.2} parent=5 // pred_check_branch
        %277 = sbr.rel (%p274) target = $region40
      $region39: #{residual_gated_gcn_layer.2} parent=5 // pred_region
        #allocation17 [shape = 'u8[4096]{0}', space=vmem, size = 0x1000, dematerialized = true, scoped, tag = 'FusionAdapter Buffer %fusion.28 = f32[2,16,128]{2,1,0:T(8,128)} fusion(%param_5.9, %param_4.8), kind=kLoop, calls=%fused_computation.25.clone, metadata={op_name="jit(residual_gated_gcn_layer)/jit(_pad)/pad" stack_frame_id=42}']
        #allocation18 [shape = 'u8[65536]{0}', space=vmem, size = 0x10000, dematerialized = true, scoped, tag = 'FusionAdapter Buffer %fusion.1 = f32[2,16,16,128]{3,2,1,0:T(8,128)} fusion(%param_3.18, %param_4.8), kind=kLoop, calls=%fused_computation.1.clone, metadata={op_name="jit(residual_gated_gcn_layer)/jit(_pad)/pad" stack_frame_id=44}']
        %s278 = ssub.s32 %s22, 1
        %p279 = scmp.lt.s32.totalorder %s31, 1
        %s280 = scalar_select %p279, %s31, 1
        %p281 = scmp.lt.s32.totalorder %s32, 1
        %s282 = scalar_select %p281, %s32, 1
        %s283 = smul.addr %s280, 2
        %s284 = sadd.s32 %s282, %s283
        %s285 = smul.addr %s284, 8
        %s286 = scalar_lea.vmem %s5, %s285
        %p287 = pneg %p62
        %p288 = pneg %p59
        %s289 = smul.u32 8, %s32
        %p290 = scmp.lt.s32.totalorder %s31, 1
        %s291 = scalar_select %p290, %s31, 1
        %p292 = scmp.lt.s32.totalorder %s289, 15
        %s293 = scalar_select %p292, %s289, 15
        %s294 = smul.addr %s293, 2
        %s295 = smul.addr %s291, 32
        %s296 = sadd.s32 %s294, %s295
        %s297 = smul.addr %s296, 8
        %s298 = scalar_lea.vmem %s3, %s297
        %p299 = pneg %p90
        %p300 = pneg %p87
        %p301 = scmp.lt.s32.totalorder %s31, 1
        %s302 = scalar_select %p301, %s31, 1
        %s303 = smul.addr %s302, 8
        %s304 = smul.addr %s303, 8
        %s305 = scalar_lea.vmem %s0, %s304
        %p306 = pneg %p116
        %p307 = pneg %p113
        %p308 = pneg %p137
        %p309 = pneg %p134
        %p310 = pneg %p158
        %p311 = pneg %p155
        %p312 = pneg %p186
        %p313 = pneg %p183
        %s314 = sand.u32 %s173, 1
        %s315 = scalar_lea.sflag [#allocation14], %s314
        %s316 = sand.u32 %s173, 1
        %s317 = smul.addr %s316, 8
        %s318 = scalar_lea.vmem [#allocation13], %s317
        %p319 = pneg %p214
        %p320 = pneg %p211
        %s321 = sand.u32 %s201, 1
        %s322 = scalar_lea.sflag [#allocation16], %s321
        %s323 = sand.u32 %s201, 1
        %s324 = smul.addr %s323, 128
        %s325 = scalar_lea.vmem [#allocation15], %s324
        %p326 = scmp.lt.s32.totalorder %s31, 1
        %s327 = scalar_select %p326, %s31, 1
        %p328 = scmp.lt.s32.totalorder %s32, 1
        %s329 = scalar_select %p328, %s32, 1
        %s330 = smul.addr %s327, 2
        %s331 = sadd.s32 %s329, %s330
        %s332 = smul.addr %s331, 8
        %s333 = scalar_lea.vmem %s5, %s332
        %s334 = smul.u32 8, %s32
        %p335 = scmp.lt.s32.totalorder %s31, 1
        %s336 = scalar_select %p335, %s31, 1
        %p337 = scmp.lt.s32.totalorder %s334, 15
        %s338 = scalar_select %p337, %s334, 15
        %s339 = smul.addr %s338, 2
        %s340 = smul.addr %s336, 32
        %s341 = sadd.s32 %s339, %s340
        %s342 = smul.addr %s341, 8
        %s343 = scalar_lea.vmem %s3, %s342
        %s344 = smul.u32 8, %s32
        %p345 = scmp.lt.s32.totalorder %s31, 1
        %s346 = scalar_select %p345, %s31, 1
        %s347 = smul.addr %s346, 8
        %s348 = smul.addr %s347, 8
        %s349 = scalar_lea.vmem %s0, %s348
        %s350 = smul.u32 8, %s32
        %v351 = vld [vmem:[%s333] sm:$0xff]
        %v352 = vlaneseq
        %v353 = vand.u32 %v352, 127
        %vm355 = vcmp.lt.s32.totalorder %v353, 32
        %v356 = vsel %vm355, %v351, %v13
        %s358 = ssub.s32 256, 1
        %359 = vst [vmem:[#allocation17] sm:%s358] %v356
        %v360 = vld [vmem:[%s343] sm:$0xff]
        %v361 = vlaneseq
        %v362 = vand.u32 %v361, 127
        %vm364 = vcmp.lt.s32.totalorder %v362, 32
        %v365 = vsel %vm364, %v360, %v14
        %s367 = ssub.s32 256, 1
        %368 = vst [vmem:[#allocation18] sm:%s367] %v365
        %s369 = scalar_lea.vmem %s343, 8
        %v370 = vld [vmem:[%s369] sm:$0xff]
        %v371 = vlaneseq
        %v372 = vand.u32 %v371, 127
        %vm374 = vcmp.lt.s32.totalorder %v372, 32
        %v375 = vsel %vm374, %v370, %v14
        %s376 = scalar_lea.vmem [#allocation18], 8
        %s378 = ssub.s32 256, 1
        %379 = vst [vmem:[%s376] sm:%s378] %v375
        %s380 = scalar_lea.vmem %s343, 16
        %v381 = vld [vmem:[%s380] sm:$0xff]
        %v382 = vlaneseq
        %v383 = vand.u32 %v382, 127
        %vm385 = vcmp.lt.s32.totalorder %v383, 32
        %v386 = vsel %vm385, %v381, %v14
        %s387 = scalar_lea.vmem [#allocation18], 16
        %s389 = ssub.s32 256, 1
        %390 = vst [vmem:[%s387] sm:%s389] %v386
        %s391 = scalar_lea.vmem %s343, 24
        %v392 = vld [vmem:[%s391] sm:$0xff]
        %v393 = vlaneseq
        %v394 = vand.u32 %v393, 127
        %vm396 = vcmp.lt.s32.totalorder %v394, 32
        %v397 = vsel %vm396, %v392, %v14
        %s398 = scalar_lea.vmem [#allocation18], 24
        %s400 = ssub.s32 256, 1
        %401 = vst [vmem:[%s398] sm:%s400] %v397
        %s402 = scalar_lea.vmem %s343, 32
        %v403 = vld [vmem:[%s402] sm:$0xff]
        %v404 = vlaneseq
        %v405 = vand.u32 %v404, 127
        %vm407 = vcmp.lt.s32.totalorder %v405, 32
        %v408 = vsel %vm407, %v403, %v14
        %s409 = scalar_lea.vmem [#allocation18], 32
        %s411 = ssub.s32 256, 1
        %412 = vst [vmem:[%s409] sm:%s411] %v408
        %s413 = scalar_lea.vmem %s343, 40
        %v414 = vld [vmem:[%s413] sm:$0xff]
        %v415 = vlaneseq
        %v416 = vand.u32 %v415, 127
        %vm418 = vcmp.lt.s32.totalorder %v416, 32
        %v419 = vsel %vm418, %v414, %v14
        %s420 = scalar_lea.vmem [#allocation18], 40
        %s422 = ssub.s32 256, 1
        %423 = vst [vmem:[%s420] sm:%s422] %v419
        %s424 = scalar_lea.vmem %s343, 48
        %v425 = vld [vmem:[%s424] sm:$0xff]
        %v426 = vlaneseq
        %v427 = vand.u32 %v426, 127
        %vm429 = vcmp.lt.s32.totalorder %v427, 32
        %v430 = vsel %vm429, %v425, %v14
        %s431 = scalar_lea.vmem [#allocation18], 48
        %s433 = ssub.s32 256, 1
        %434 = vst [vmem:[%s431] sm:%s433] %v430
        %s435 = scalar_lea.vmem %s343, 56
        %v436 = vld [vmem:[%s435] sm:$0xff]
        %v437 = vlaneseq
        %v438 = vand.u32 %v437, 127
        %vm440 = vcmp.lt.s32.totalorder %v438, 32
        %v441 = vsel %vm440, %v436, %v14
        %s442 = scalar_lea.vmem [#allocation18], 56
        %s444 = ssub.s32 256, 1
        %445 = vst [vmem:[%s442] sm:%s444] %v441
        %s446 = scalar_lea.vmem %s343, 64
        %v447 = vld [vmem:[%s446] sm:$0xff]
        %v448 = vlaneseq
        %v449 = vand.u32 %v448, 127
        %vm451 = vcmp.lt.s32.totalorder %v449, 32
        %v452 = vsel %vm451, %v447, %v14
        %s453 = scalar_lea.vmem [#allocation18], 64
        %s455 = ssub.s32 256, 1
        %456 = vst [vmem:[%s453] sm:%s455] %v452
        %s457 = scalar_lea.vmem %s343, 72
        %v458 = vld [vmem:[%s457] sm:$0xff]
        %v459 = vlaneseq
        %v460 = vand.u32 %v459, 127
        %vm462 = vcmp.lt.s32.totalorder %v460, 32
        %v463 = vsel %vm462, %v458, %v14
        %s464 = scalar_lea.vmem [#allocation18], 72
        %s466 = ssub.s32 256, 1
        %467 = vst [vmem:[%s464] sm:%s466] %v463
        %s468 = scalar_lea.vmem %s343, 80
        %v469 = vld [vmem:[%s468] sm:$0xff]
        %v470 = vlaneseq
        %v471 = vand.u32 %v470, 127
        %vm473 = vcmp.lt.s32.totalorder %v471, 32
        %v474 = vsel %vm473, %v469, %v14
        %s475 = scalar_lea.vmem [#allocation18], 80
        %s477 = ssub.s32 256, 1
        %478 = vst [vmem:[%s475] sm:%s477] %v474
        %s479 = scalar_lea.vmem %s343, 88
        %v480 = vld [vmem:[%s479] sm:$0xff]
        %v481 = vlaneseq
        %v482 = vand.u32 %v481, 127
        %vm484 = vcmp.lt.s32.totalorder %v482, 32
        %v485 = vsel %vm484, %v480, %v14
        %s486 = scalar_lea.vmem [#allocation18], 88
        %s488 = ssub.s32 256, 1
        %489 = vst [vmem:[%s486] sm:%s488] %v485
        %s490 = scalar_lea.vmem %s343, 96
        %v491 = vld [vmem:[%s490] sm:$0xff]
        %v492 = vlaneseq
        %v493 = vand.u32 %v492, 127
        %vm495 = vcmp.lt.s32.totalorder %v493, 32
        %v496 = vsel %vm495, %v491, %v14
        %s497 = scalar_lea.vmem [#allocation18], 96
        %s499 = ssub.s32 256, 1
        %500 = vst [vmem:[%s497] sm:%s499] %v496
        %s501 = scalar_lea.vmem %s343, 104
        %v502 = vld [vmem:[%s501] sm:$0xff]
        %v503 = vlaneseq
        %v504 = vand.u32 %v503, 127
        %vm506 = vcmp.lt.s32.totalorder %v504, 32
        %v507 = vsel %vm506, %v502, %v14
        %s508 = scalar_lea.vmem [#allocation18], 104
        %s510 = ssub.s32 256, 1
        %511 = vst [vmem:[%s508] sm:%s510] %v507
        %s512 = scalar_lea.vmem %s343, 112
        %v513 = vld [vmem:[%s512] sm:$0xff]
        %v514 = vlaneseq
        %v515 = vand.u32 %v514, 127
        %vm517 = vcmp.lt.s32.totalorder %v515, 32
        %v518 = vsel %vm517, %v513, %v14
        %s519 = scalar_lea.vmem [#allocation18], 112
        %s521 = ssub.s32 256, 1
        %522 = vst [vmem:[%s519] sm:%s521] %v518
        %s523 = scalar_lea.vmem %s343, 120
        %v524 = vld [vmem:[%s523] sm:$0xff]
        %v525 = vlaneseq
        %v526 = vand.u32 %v525, 127
        %vm528 = vcmp.lt.s32.totalorder %v526, 32
        %v529 = vsel %vm528, %v524, %v14
        %s530 = scalar_lea.vmem [#allocation18], 120
        %s532 = ssub.s32 256, 1
        %533 = vst [vmem:[%s530] sm:%s532] %v529
        %s534 = smul.u32 %s32, 8
        %s535 = sshra.s32 %s534, 3
        %s536 = sand.u32 %s534, 7
        %s537 = smul.u32 %s535, 4
        %s538 = smul.addr %s537, 8
        %s539 = scalar_lea.vmem %s349, %s538
        %v540 = vld [vmem:[%s539] sm:$0xff]
        %v541 = vld [vmem:[%s539 + $0x8] sm:$0xff]
        %v542 = vld [vmem:[%s2] sm:$0xf]
        %v543 = vld [vmem:[%s349 + $0x18] sm:$0xff]
        %v544 = vld [vmem:[%s349 + $0x38] sm:$0xff]
        %v545 = vadd.f32 %v543, %v544
        %v546 = vrot.slane %v545, 4
        %v547 = vadd.f32 %v545, %v546
        %v548 = vrot.slane %v547, 2
        %v549 = vadd.f32 %v547, %v548
        %v550 = vrot.slane %v549, 1
        %v551 = vadd.f32 %v549, %v550
        %v552 = vmul.f32 %v551, 0.5
        %553 = vst [vmem:[#allocation2] sm:$0xff] 0.0
        %v554 = vld [vmem:[#allocation18] sm:$0xff]
        %v555 = vld [vmem:[#allocation18 + $0x8] sm:$0xff]
        %v556 = vld [vmem:[#allocation18 + $0x10] sm:$0xff]
        %v557 = vld [vmem:[#allocation18 + $0x18] sm:$0xff]
        %v558 = vld [vmem:[#allocation18 + $0x20] sm:$0xff]
        %v559 = vld [vmem:[#allocation18 + $0x28] sm:$0xff]
        %v560 = vld [vmem:[#allocation18 + $0x30] sm:$0xff]
        %v561 = vld [vmem:[#allocation18 + $0x38] sm:$0xff]
        %v562 = vld [vmem:[#allocation18 + $0x40] sm:$0xff]
        %v563 = vld [vmem:[#allocation18 + $0x48] sm:$0xff]
        %v564 = vld [vmem:[#allocation18 + $0x50] sm:$0xff]
        %v565 = vld [vmem:[#allocation18 + $0x58] sm:$0xff]
        %v566 = vld [vmem:[#allocation18 + $0x60] sm:$0xff]
        %v567 = vld [vmem:[#allocation18 + $0x68] sm:$0xff]
        %v568 = vld [vmem:[#allocation18 + $0x70] sm:$0xff]
        %v569 = vld [vmem:[#allocation18 + $0x78] sm:$0xff]
        %v570 = vld [vmem:[%s349 + $0x10] sm:$0xff]
        %v571 = vld [vmem:[%s349 + $0x18] sm:$0xff]
        %v572 = vld [vmem:[%s349 + $0x30] sm:$0xff]
        %v573 = vld [vmem:[%s349 + $0x38] sm:$0xff]
        %v574 = vld [vmem:[%s1] sm:$0xff]
        %v575 = vld [vmem:[%s1 + $0x8] sm:$0xff]
        %v576 = vld [vmem:[%s1 + $0x10] sm:$0xff]
        %v577 = vld [vmem:[%s1 + $0x18] sm:$0xff]
        %v578 = vld [vmem:[%s1 + $0x20] sm:$0xff]
        %v579 = vld [vmem:[%s1 + $0x28] sm:$0xff]
        %v580 = vld [vmem:[%s1 + $0x30] sm:$0xff]
        %v581 = vld [vmem:[%s1 + $0x38] sm:$0xff]
        %v582 = vld [vmem:[%s1 + $0x40] sm:$0xff]
        %v583 = vld [vmem:[%s1 + $0x48] sm:$0xff]
        %v584 = vld [vmem:[%s1 + $0x50] sm:$0xff]
        %v585 = vld [vmem:[%s1 + $0x58] sm:$0xff]
        %v586 = vld [vmem:[%s1 + $0x60] sm:$0xff]
        %v587 = vld [vmem:[%s1 + $0x68] sm:$0xff]
        %v588 = vld [vmem:[%s1 + $0x70] sm:$0xff]
        %v589 = vld [vmem:[%s1 + $0x78] sm:$0xff]
        %590 = vmatpush.msra.mxu0 %v589
        %591 = vmatpush.msra.mxu0 %v588
        %592 = vmatpush.msra.mxu0 %v587
        %593 = vmatpush.msra.mxu0 %v586
        %594 = vmatpush.msra.mxu0 %v585
        %595 = vmatpush.msra.mxu0 %v584
        %596 = vmatpush.msra.mxu0 %v583
        %597 = vmatpush.msra.mxu0 %v582
        %598 = vmatpush.msra.mxu0 %v581
        %599 = vmatpush.msra.mxu0 %v580
        %600 = vmatpush.msra.mxu0 %v579
        %601 = vmatpush.msra.mxu0 %v578
        %602 = vmatpush.msra.mxu0 %v577
        %603 = vmatpush.msra.mxu0 %v576
        %604 = vmatpush.msra.mxu0 %v575
        %605 = vmatpush.msra.mxu0 %v574
        %606 = vmatmul.f32.gmra.mxu0 %v554
        %v607 = vpop.f32.mrf.mxu0
        %v608 = vadd.f32 0.0, %v607
        %609 = vmatmul.f32.gmra.mxu0 %v555
        %v610 = vpop.f32.mrf.mxu0
        %v611 = vadd.f32 0.0, %v610
        %612 = vmatmul.f32.gmra.mxu0 %v556
        %v613 = vpop.f32.mrf.mxu0
        %v614 = vadd.f32 0.0, %v613
        %615 = vmatmul.f32.gmra.mxu0 %v557
        %v616 = vpop.f32.mrf.mxu0
        %v617 = vadd.f32 0.0, %v616
        %618 = vmatmul.f32.gmra.mxu0 %v558
        %v619 = vpop.f32.mrf.mxu0
        %v620 = vadd.f32 0.0, %v619
        %621 = vmatmul.f32.gmra.mxu0 %v559
        %v622 = vpop.f32.mrf.mxu0
        %v623 = vadd.f32 0.0, %v622
        %624 = vmatmul.f32.gmra.mxu0 %v560
        %v625 = vpop.f32.mrf.mxu0
        %v626 = vadd.f32 0.0, %v625
        %627 = vmatmul.f32.gmra.mxu0 %v561
        %v628 = vpop.f32.mrf.mxu0
        %v629 = vadd.f32 0.0, %v628
        %630 = vmatmul.f32.gmra.mxu0 %v562
        %v631 = vpop.f32.mrf.mxu0
        %v632 = vadd.f32 0.0, %v631
        %633 = vmatmul.f32.gmra.mxu0 %v563
        %v634 = vpop.f32.mrf.mxu0
        %v635 = vadd.f32 0.0, %v634
        %636 = vmatmul.f32.gmra.mxu0 %v564
        %v637 = vpop.f32.mrf.mxu0
        %v638 = vadd.f32 0.0, %v637
        %639 = vmatmul.f32.gmra.mxu0 %v565
        %v640 = vpop.f32.mrf.mxu0
        %v641 = vadd.f32 0.0, %v640
        %642 = vmatmul.f32.gmra.mxu0 %v566
        %v643 = vpop.f32.mrf.mxu0
        %v644 = vadd.f32 0.0, %v643
        %645 = vmatmul.f32.gmra.mxu0 %v567
        %v646 = vpop.f32.mrf.mxu0
        %v647 = vadd.f32 0.0, %v646
        %648 = vmatmul.f32.gmra.mxu0 %v568
        %v649 = vpop.f32.mrf.mxu0
        %v650 = vadd.f32 0.0, %v649
        %651 = vmatmul.f32.gmra.mxu0 %v569
        %v652 = vpop.f32.mrf.mxu0
        %v653 = vadd.f32 0.0, %v652
        %654 = vdwg.mxu0
        %v656 = vrot.slane %v541, 1
        %v657 = vrot.slane %v541, 2
        %v658 = vrot.slane %v541, 3
        %v659 = vrot.slane %v541, 4
        %v660 = vrot.slane %v541, 5
        %v661 = vrot.slane %v541, 6
        %v662 = vrot.slane %v541, 7
        %v663 = vperm.slane %v541, 0
        %v664 = vperm.slane %v656, 0
        %v665 = vperm.slane %v657, 0
        %v666 = vperm.slane %v658, 0
        %v667 = vperm.slane %v659, 0
        %v668 = vperm.slane %v660, 0
        %v669 = vperm.slane %v661, 0
        %v670 = vperm.slane %v662, 0
        %v679 = vadd.f32 %v608, %v663
        %v680 = vadd.f32 %v611, %v663
        %v681 = vadd.f32 %v614, %v664
        %v682 = vadd.f32 %v617, %v664
        %v683 = vadd.f32 %v620, %v665
        %v684 = vadd.f32 %v623, %v665
        %v685 = vadd.f32 %v626, %v666
        %v686 = vadd.f32 %v629, %v666
        %v687 = vadd.f32 %v632, %v667
        %v688 = vadd.f32 %v635, %v667
        %v689 = vadd.f32 %v638, %v668
        %v690 = vadd.f32 %v641, %v668
        %v691 = vadd.f32 %v644, %v669
        %v692 = vadd.f32 %v647, %v669
        %v693 = vadd.f32 %v650, %v670
        %v694 = vadd.f32 %v653, %v670
        %v695 = vadd.f32 %v679, %v570
        %v696 = vadd.f32 %v680, %v572
        %v697 = vadd.f32 %v681, %v570
        %v698 = vadd.f32 %v682, %v572
        %v699 = vadd.f32 %v683, %v570
        %v700 = vadd.f32 %v684, %v572
        %v701 = vadd.f32 %v685, %v570
        %v702 = vadd.f32 %v686, %v572
        %v703 = vadd.f32 %v687, %v570
        %v704 = vadd.f32 %v688, %v572
        %v705 = vadd.f32 %v689, %v570
        %v706 = vadd.f32 %v690, %v572
        %v707 = vadd.f32 %v691, %v570
        %v708 = vadd.f32 %v692, %v572
        %v709 = vadd.f32 %v693, %v570
        %v710 = vadd.f32 %v694, %v572
        %v711 = vmul.f32 %v695, 0.5
        %v712 = vmul.f32 %v696, 0.5
        %v713 = vmul.f32 %v697, 0.5
        %v714 = vmul.f32 %v698, 0.5
        %v715 = vmul.f32 %v699, 0.5
        %v716 = vmul.f32 %v700, 0.5
        %v717 = vmul.f32 %v701, 0.5
        %v718 = vmul.f32 %v702, 0.5
        %v719 = vmul.f32 %v703, 0.5
        %v720 = vmul.f32 %v704, 0.5
        %v721 = vmul.f32 %v705, 0.5
        %v722 = vmul.f32 %v706, 0.5
        %v723 = vmul.f32 %v707, 0.5
        %v724 = vmul.f32 %v708, 0.5
        %v725 = vmul.f32 %v709, 0.5
        %v726 = vmul.f32 %v710, 0.5
        %v727 = vtanh.pop %v711
        %v728 = vtanh.pop %v712
        %v729 = vtanh.pop %v713
        %v730 = vtanh.pop %v714
        %v731 = vtanh.pop %v715
        %v732 = vtanh.pop %v716
        %v733 = vtanh.pop %v717
        %v734 = vtanh.pop %v718
        %v735 = vtanh.pop %v719
        %v736 = vtanh.pop %v720
        %v737 = vtanh.pop %v721
        %v738 = vtanh.pop %v722
        %v739 = vtanh.pop %v723
        %v740 = vtanh.pop %v724
        %v741 = vtanh.pop %v725
        %v742 = vtanh.pop %v726
        %v743 = vld [vmem:[#allocation2] sm:$0xff]
        %v744 = vmul.f32 %v727, %v571
        %v745 = vmul.f32 %v728, %v573
        %v746 = vmul.f32 %v729, %v571
        %v747 = vmul.f32 %v730, %v573
        %v748 = vmul.f32 %v731, %v571
        %v749 = vmul.f32 %v732, %v573
        %v750 = vmul.f32 %v733, %v571
        %v751 = vmul.f32 %v734, %v573
        %v752 = vmul.f32 %v735, %v571
        %v753 = vmul.f32 %v736, %v573
        %v754 = vmul.f32 %v737, %v571
        %v755 = vmul.f32 %v738, %v573
        %v756 = vmul.f32 %v739, %v571
        %v757 = vmul.f32 %v740, %v573
        %v758 = vmul.f32 %v741, %v571
        %v759 = vmul.f32 %v742, %v573
        %v760 = vadd.f32 %v744, %v745
        %v761 = vrot.slane %v760, 4
        %v762 = vadd.f32 %v760, %v761
        %v763 = vrot.slane %v762, 2
        %v764 = vadd.f32 %v762, %v763
        %v765 = vrot.slane %v764, 1
        %v766 = vadd.f32 %v764, %v765
        %v767 = vadd.f32 %v746, %v747
        %v768 = vrot.slane %v767, 4
        %v769 = vadd.f32 %v767, %v768
        %v770 = vrot.slane %v769, 2
        %v771 = vadd.f32 %v769, %v770
        %v772 = vrot.slane %v771, 1
        %v773 = vadd.f32 %v771, %v772
        %v774 = vadd.f32 %v748, %v749
        %v775 = vrot.slane %v774, 4
        %v776 = vadd.f32 %v774, %v775
        %v777 = vrot.slane %v776, 2
        %v778 = vadd.f32 %v776, %v777
        %v779 = vrot.slane %v778, 1
        %v780 = vadd.f32 %v778, %v779
        %v781 = vadd.f32 %v750, %v751
        %v782 = vrot.slane %v781, 4
        %v783 = vadd.f32 %v781, %v782
        %v784 = vrot.slane %v783, 2
        %v785 = vadd.f32 %v783, %v784
        %v786 = vrot.slane %v785, 1
        %v787 = vadd.f32 %v785, %v786
        %v788 = vadd.f32 %v752, %v753
        %v789 = vrot.slane %v788, 4
        %v790 = vadd.f32 %v788, %v789
        %v791 = vrot.slane %v790, 2
        %v792 = vadd.f32 %v790, %v791
        %v793 = vrot.slane %v792, 1
        %v794 = vadd.f32 %v792, %v793
        %v795 = vadd.f32 %v754, %v755
        %v796 = vrot.slane %v795, 4
        %v797 = vadd.f32 %v795, %v796
        %v798 = vrot.slane %v797, 2
        %v799 = vadd.f32 %v797, %v798
        %v800 = vrot.slane %v799, 1
        %v801 = vadd.f32 %v799, %v800
        %v802 = vadd.f32 %v756, %v757
        %v803 = vrot.slane %v802, 4
        %v804 = vadd.f32 %v802, %v803
        %v805 = vrot.slane %v804, 2
        %v806 = vadd.f32 %v804, %v805
        %v807 = vrot.slane %v806, 1
        %v808 = vadd.f32 %v806, %v807
        %v809 = vadd.f32 %v758, %v759
        %v810 = vrot.slane %v809, 4
        %v811 = vadd.f32 %v809, %v810
        %v812 = vrot.slane %v811, 2
        %v813 = vadd.f32 %v811, %v812
        %v814 = vrot.slane %v813, 1
        %v815 = vadd.f32 %v813, %v814
        %vm824 = vcmask 1041409
        %v825 = vsel %vm824, %v773, %v766
        %vm826 = vcmask 1042434
        %v827 = vsel %vm826, %v780, %v825
        %vm828 = vcmask 1043459
        %v829 = vsel %vm828, %v787, %v827
        %vm830 = vcmask 1044484
        %v831 = vsel %vm830, %v794, %v829
        %vm832 = vcmask 1045509
        %v833 = vsel %vm832, %v801, %v831
        %vm834 = vcmask 1046534
        %v835 = vsel %vm834, %v808, %v833
        %vm836 = vcmask 1047559
        %v837 = vsel %vm836, %v815, %v835
        %v839 = vadd.f32 %v743, %v837
        %840 = vst [vmem:[#allocation2] sm:$0xff] %v839
        %vm841 = vcmp.ge.f32.partialorder %v695, 0.0
        %vm842 = vcmp.ge.f32.partialorder %v696, 0.0
        %vm843 = vcmp.ge.f32.partialorder %v697, 0.0
        %vm844 = vcmp.ge.f32.partialorder %v698, 0.0
        %vm845 = vcmp.ge.f32.partialorder %v699, 0.0
        %vm846 = vcmp.ge.f32.partialorder %v700, 0.0
        %vm847 = vcmp.ge.f32.partialorder %v701, 0.0
        %vm848 = vcmp.ge.f32.partialorder %v702, 0.0
        %vm849 = vcmp.ge.f32.partialorder %v703, 0.0
        %vm850 = vcmp.ge.f32.partialorder %v704, 0.0
        %vm851 = vcmp.ge.f32.partialorder %v705, 0.0
        %vm852 = vcmp.ge.f32.partialorder %v706, 0.0
        %vm853 = vcmp.ge.f32.partialorder %v707, 0.0
        %vm854 = vcmp.ge.f32.partialorder %v708, 0.0
        %vm855 = vcmp.ge.f32.partialorder %v709, 0.0
        %vm856 = vcmp.ge.f32.partialorder %v710, 0.0
        %v857 = vmul.f32 %v695, 0.01
        %v858 = vmul.f32 %v696, 0.01
        %v859 = vmul.f32 %v697, 0.01
        %v860 = vmul.f32 %v698, 0.01
        %v861 = vmul.f32 %v699, 0.01
        %v862 = vmul.f32 %v700, 0.01
        %v863 = vmul.f32 %v701, 0.01
        %v864 = vmul.f32 %v702, 0.01
        %v865 = vmul.f32 %v703, 0.01
        %v866 = vmul.f32 %v704, 0.01
        %v867 = vmul.f32 %v705, 0.01
        %v868 = vmul.f32 %v706, 0.01
        %v869 = vmul.f32 %v707, 0.01
        %v870 = vmul.f32 %v708, 0.01
        %v871 = vmul.f32 %v709, 0.01
        %v872 = vmul.f32 %v710, 0.01
        %v873 = vsel %vm841, %v695, %v857
        %v874 = vsel %vm842, %v696, %v858
        %v875 = vsel %vm843, %v697, %v859
        %v876 = vsel %vm844, %v698, %v860
        %v877 = vsel %vm845, %v699, %v861
        %v878 = vsel %vm846, %v700, %v862
        %v879 = vsel %vm847, %v701, %v863
        %v880 = vsel %vm848, %v702, %v864
        %v881 = vsel %vm849, %v703, %v865
        %v882 = vsel %vm850, %v704, %v866
        %v883 = vsel %vm851, %v705, %v867
        %v884 = vsel %vm852, %v706, %v868
        %v885 = vsel %vm853, %v707, %v869
        %v886 = vsel %vm854, %v708, %v870
        %v887 = vsel %vm855, %v709, %v871
        %v888 = vsel %vm856, %v710, %v872
        %889 = vadd.xlane.f32.xlu0 %v873
        %v890 = vpop.xlane.xlu0 %889
        %891 = vadd.xlane.f32.xlu0 %v874
        %v892 = vpop.xlane.xlu0 %891
        %893 = vadd.xlane.f32.xlu0 %v875
        %v894 = vpop.xlane.xlu0 %893
        %895 = vadd.xlane.f32.xlu0 %v876
        %v896 = vpop.xlane.xlu0 %895
        %897 = vadd.xlane.f32.xlu0 %v877
        %v898 = vpop.xlane.xlu0 %897
        %899 = vadd.xlane.f32.xlu0 %v878
        %v900 = vpop.xlane.xlu0 %899
        %901 = vadd.xlane.f32.xlu0 %v879
        %v902 = vpop.xlane.xlu0 %901
        %903 = vadd.xlane.f32.xlu0 %v880
        %v904 = vpop.xlane.xlu0 %903
        %905 = vadd.xlane.f32.xlu0 %v881
        %v906 = vpop.xlane.xlu0 %905
        %907 = vadd.xlane.f32.xlu0 %v882
        %v908 = vpop.xlane.xlu0 %907
        %909 = vadd.xlane.f32.xlu0 %v883
        %v910 = vpop.xlane.xlu0 %909
        %911 = vadd.xlane.f32.xlu0 %v884
        %v912 = vpop.xlane.xlu0 %911
        %913 = vadd.xlane.f32.xlu0 %v885
        %v914 = vpop.xlane.xlu0 %913
        %915 = vadd.xlane.f32.xlu0 %v886
        %v916 = vpop.xlane.xlu0 %915
        %917 = vadd.xlane.f32.xlu0 %v887
        %v918 = vpop.xlane.xlu0 %917
        %919 = vadd.xlane.f32.xlu0 %v888
        %v920 = vpop.xlane.xlu0 %919
        %v921 = vmul.f32 %v890, 0.03125
        %v922 = vmul.f32 %v892, 0.03125
        %v923 = vmul.f32 %v894, 0.03125
        %v924 = vmul.f32 %v896, 0.03125
        %v925 = vmul.f32 %v898, 0.03125
        %v926 = vmul.f32 %v900, 0.03125
        %v927 = vmul.f32 %v902, 0.03125
        %v928 = vmul.f32 %v904, 0.03125
        %v929 = vmul.f32 %v906, 0.03125
        %v930 = vmul.f32 %v908, 0.03125
        %v931 = vmul.f32 %v910, 0.03125
        %v932 = vmul.f32 %v912, 0.03125
        %v933 = vmul.f32 %v914, 0.03125
        %v934 = vmul.f32 %v916, 0.03125
        %v935 = vmul.f32 %v918, 0.03125
        %v936 = vmul.f32 %v920, 0.03125
        %v937 = vsub.f32 %v873, %v921
        %v938 = vsub.f32 %v874, %v922
        %v939 = vsub.f32 %v875, %v923
        %v940 = vsub.f32 %v876, %v924
        %v941 = vsub.f32 %v877, %v925
        %v942 = vsub.f32 %v878, %v926
        %v943 = vsub.f32 %v879, %v927
        %v944 = vsub.f32 %v880, %v928
        %v945 = vsub.f32 %v881, %v929
        %v946 = vsub.f32 %v882, %v930
        %v947 = vsub.f32 %v883, %v931
        %v948 = vsub.f32 %v884, %v932
        %v949 = vsub.f32 %v885, %v933
        %v950 = vsub.f32 %v886, %v934
        %v951 = vsub.f32 %v887, %v935
        %v952 = vsub.f32 %v888, %v936
        %v953 = vmul.f32 %v937, %v937
        %v954 = vmul.f32 %v938, %v938
        %v955 = vmul.f32 %v939, %v939
        %v956 = vmul.f32 %v940, %v940
        %v957 = vmul.f32 %v941, %v941
        %v958 = vmul.f32 %v942, %v942
        %v959 = vmul.f32 %v943, %v943
        %v960 = vmul.f32 %v944, %v944
        %v961 = vmul.f32 %v945, %v945
        %v962 = vmul.f32 %v946, %v946
        %v963 = vmul.f32 %v947, %v947
        %v964 = vmul.f32 %v948, %v948
        %v965 = vmul.f32 %v949, %v949
        %v966 = vmul.f32 %v950, %v950
        %v967 = vmul.f32 %v951, %v951
        %v968 = vmul.f32 %v952, %v952
        %969 = vadd.xlane.f32.xlu0 %v953
        %v970 = vpop.xlane.xlu0 %969
        %971 = vadd.xlane.f32.xlu0 %v954
        %v972 = vpop.xlane.xlu0 %971
        %973 = vadd.xlane.f32.xlu0 %v955
        %v974 = vpop.xlane.xlu0 %973
        %975 = vadd.xlane.f32.xlu0 %v956
        %v976 = vpop.xlane.xlu0 %975
        %977 = vadd.xlane.f32.xlu0 %v957
        %v978 = vpop.xlane.xlu0 %977
        %979 = vadd.xlane.f32.xlu0 %v958
        %v980 = vpop.xlane.xlu0 %979
        %981 = vadd.xlane.f32.xlu0 %v959
        %v982 = vpop.xlane.xlu0 %981
        %983 = vadd.xlane.f32.xlu0 %v960
        %v984 = vpop.xlane.xlu0 %983
        %985 = vadd.xlane.f32.xlu0 %v961
        %v986 = vpop.xlane.xlu0 %985
        %987 = vadd.xlane.f32.xlu0 %v962
        %v988 = vpop.xlane.xlu0 %987
        %989 = vadd.xlane.f32.xlu0 %v963
        %v990 = vpop.xlane.xlu0 %989
        %991 = vadd.xlane.f32.xlu0 %v964
        %v992 = vpop.xlane.xlu0 %991
        %993 = vadd.xlane.f32.xlu0 %v965
        %v994 = vpop.xlane.xlu0 %993
        %995 = vadd.xlane.f32.xlu0 %v966
        %v996 = vpop.xlane.xlu0 %995
        %997 = vadd.xlane.f32.xlu0 %v967
        %v998 = vpop.xlane.xlu0 %997
        %999 = vadd.xlane.f32.xlu0 %v968
        %v1000 = vpop.xlane.xlu0 %999
        %v1001 = vmul.f32 %v921, %v921
        %v1002 = vmul.f32 %v922, %v922
        %v1003 = vmul.f32 %v923, %v923
        %v1004 = vmul.f32 %v924, %v924
        %v1005 = vmul.f32 %v925, %v925
        %v1006 = vmul.f32 %v926, %v926
        %v1007 = vmul.f32 %v927, %v927
        %v1008 = vmul.f32 %v928, %v928
        %v1009 = vmul.f32 %v929, %v929
        %v1010 = vmul.f32 %v930, %v930
        %v1011 = vmul.f32 %v931, %v931
        %v1012 = vmul.f32 %v932, %v932
        %v1013 = vmul.f32 %v933, %v933
        %v1014 = vmul.f32 %v934, %v934
        %v1015 = vmul.f32 %v935, %v935
        %v1016 = vmul.f32 %v936, %v936
        %v1017 = vmul.f32 %v1001, 96.0
        %v1018 = vmul.f32 %v1002, 96.0
        %v1019 = vmul.f32 %v1003, 96.0
        %v1020 = vmul.f32 %v1004, 96.0
        %v1021 = vmul.f32 %v1005, 96.0
        %v1022 = vmul.f32 %v1006, 96.0
        %v1023 = vmul.f32 %v1007, 96.0
        %v1024 = vmul.f32 %v1008, 96.0
        %v1025 = vmul.f32 %v1009, 96.0
        %v1026 = vmul.f32 %v1010, 96.0
        %v1027 = vmul.f32 %v1011, 96.0
        %v1028 = vmul.f32 %v1012, 96.0
        %v1029 = vmul.f32 %v1013, 96.0
        %v1030 = vmul.f32 %v1014, 96.0
        %v1031 = vmul.f32 %v1015, 96.0
        %v1032 = vmul.f32 %v1016, 96.0
        %v1033 = vsub.f32 %v970, %v1017
        %v1034 = vsub.f32 %v972, %v1018
        %v1035 = vsub.f32 %v974, %v1019
        %v1036 = vsub.f32 %v976, %v1020
        %v1037 = vsub.f32 %v978, %v1021
        %v1038 = vsub.f32 %v980, %v1022
        %v1039 = vsub.f32 %v982, %v1023
        %v1040 = vsub.f32 %v984, %v1024
        %v1041 = vsub.f32 %v986, %v1025
        %v1042 = vsub.f32 %v988, %v1026
        %v1043 = vsub.f32 %v990, %v1027
        %v1044 = vsub.f32 %v992, %v1028
        %v1045 = vsub.f32 %v994, %v1029
        %v1046 = vsub.f32 %v996, %v1030
        %v1047 = vsub.f32 %v998, %v1031
        %v1048 = vsub.f32 %v1000, %v1032
        %v1049 = vmul.f32 %v1033, 0.03125
        %v1050 = vmul.f32 %v1034, 0.03125
        %v1051 = vmul.f32 %v1035, 0.03125
        %v1052 = vmul.f32 %v1036, 0.03125
        %v1053 = vmul.f32 %v1037, 0.03125
        %v1054 = vmul.f32 %v1038, 0.03125
        %v1055 = vmul.f32 %v1039, 0.03125
        %v1056 = vmul.f32 %v1040, 0.03125
        %v1057 = vmul.f32 %v1041, 0.03125
        %v1058 = vmul.f32 %v1042, 0.03125
        %v1059 = vmul.f32 %v1043, 0.03125
        %v1060 = vmul.f32 %v1044, 0.03125
        %v1061 = vmul.f32 %v1045, 0.03125
        %v1062 = vmul.f32 %v1046, 0.03125
        %v1063 = vmul.f32 %v1047, 0.03125
        %v1064 = vmul.f32 %v1048, 0.03125
        %v1065 = vadd.f32 %v1049, 1e-05
        %v1066 = vadd.f32 %v1050, 1e-05
        %v1067 = vadd.f32 %v1051, 1e-05
        %v1068 = vadd.f32 %v1052, 1e-05
        %v1069 = vadd.f32 %v1053, 1e-05
        %v1070 = vadd.f32 %v1054, 1e-05
        %v1071 = vadd.f32 %v1055, 1e-05
        %v1072 = vadd.f32 %v1056, 1e-05
        %v1073 = vadd.f32 %v1057, 1e-05
        %v1074 = vadd.f32 %v1058, 1e-05
        %v1075 = vadd.f32 %v1059, 1e-05
        %v1076 = vadd.f32 %v1060, 1e-05
        %v1077 = vadd.f32 %v1061, 1e-05
        %v1078 = vadd.f32 %v1062, 1e-05
        %v1079 = vadd.f32 %v1063, 1e-05
        %v1080 = vadd.f32 %v1064, 1e-05
        %v1081 = vrsqrt.pop %v1065
        %v1082 = vmul.f32 %v1081, %v1065
        %v1083 = vmul.f32 %v1082, %v1081
        %v1084 = vmul.f32 0.5, %v1083
        %v1085 = vsub.f32 1.5, %v1084
        %v1086 = vmul.f32 %v1081, %v1085
        %vm1087 = vweird.f32 %v1065
        %vm1088 = vweird.f32 %v1081
        %vm1089 = vmor %vm1087, %vm1088
        %v1090 = vsel %vm1089, %v1081, %v1086
        %v1091 = vrsqrt.pop %v1066
        %v1092 = vmul.f32 %v1091, %v1066
        %v1093 = vmul.f32 %v1092, %v1091
        %v1094 = vmul.f32 0.5, %v1093
        %v1095 = vsub.f32 1.5, %v1094
        %v1096 = vmul.f32 %v1091, %v1095
        %vm1097 = vweird.f32 %v1066
        %vm1098 = vweird.f32 %v1091
        %vm1099 = vmor %vm1097, %vm1098
        %v1100 = vsel %vm1099, %v1091, %v1096
        %v1101 = vrsqrt.pop %v1067
        %v1102 = vmul.f32 %v1101, %v1067
        %v1103 = vmul.f32 %v1102, %v1101
        %v1104 = vmul.f32 0.5, %v1103
        %v1105 = vsub.f32 1.5, %v1104
        %v1106 = vmul.f32 %v1101, %v1105
        %vm1107 = vweird.f32 %v1067
        %vm1108 = vweird.f32 %v1101
        %vm1109 = vmor %vm1107, %vm1108
        %v1110 = vsel %vm1109, %v1101, %v1106
        %v1111 = vrsqrt.pop %v1068
        %v1112 = vmul.f32 %v1111, %v1068
        %v1113 = vmul.f32 %v1112, %v1111
        %v1114 = vmul.f32 0.5, %v1113
        %v1115 = vsub.f32 1.5, %v1114
        %v1116 = vmul.f32 %v1111, %v1115
        %vm1117 = vweird.f32 %v1068
        %vm1118 = vweird.f32 %v1111
        %vm1119 = vmor %vm1117, %vm1118
        %v1120 = vsel %vm1119, %v1111, %v1116
        %v1121 = vrsqrt.pop %v1069
        %v1122 = vmul.f32 %v1121, %v1069
        %v1123 = vmul.f32 %v1122, %v1121
        %v1124 = vmul.f32 0.5, %v1123
        %v1125 = vsub.f32 1.5, %v1124
        %v1126 = vmul.f32 %v1121, %v1125
        %vm1127 = vweird.f32 %v1069
        %vm1128 = vweird.f32 %v1121
        %vm1129 = vmor %vm1127, %vm1128
        %v1130 = vsel %vm1129, %v1121, %v1126
        %v1131 = vrsqrt.pop %v1070
        %v1132 = vmul.f32 %v1131, %v1070
        %v1133 = vmul.f32 %v1132, %v1131
        %v1134 = vmul.f32 0.5, %v1133
        %v1135 = vsub.f32 1.5, %v1134
        %v1136 = vmul.f32 %v1131, %v1135
        %vm1137 = vweird.f32 %v1070
        %vm1138 = vweird.f32 %v1131
        %vm1139 = vmor %vm1137, %vm1138
        %v1140 = vsel %vm1139, %v1131, %v1136
        %v1141 = vrsqrt.pop %v1071
        %v1142 = vmul.f32 %v1141, %v1071
        %v1143 = vmul.f32 %v1142, %v1141
        %v1144 = vmul.f32 0.5, %v1143
        %v1145 = vsub.f32 1.5, %v1144
        %v1146 = vmul.f32 %v1141, %v1145
        %vm1147 = vweird.f32 %v1071
        %vm1148 = vweird.f32 %v1141
        %vm1149 = vmor %vm1147, %vm1148
        %v1150 = vsel %vm1149, %v1141, %v1146
        %v1151 = vrsqrt.pop %v1072
        %v1152 = vmul.f32 %v1151, %v1072
        %v1153 = vmul.f32 %v1152, %v1151
        %v1154 = vmul.f32 0.5, %v1153
        %v1155 = vsub.f32 1.5, %v1154
        %v1156 = vmul.f32 %v1151, %v1155
        %vm1157 = vweird.f32 %v1072
        %vm1158 = vweird.f32 %v1151
        %vm1159 = vmor %vm1157, %vm1158
        %v1160 = vsel %vm1159, %v1151, %v1156
        %v1161 = vrsqrt.pop %v1073
        %v1162 = vmul.f32 %v1161, %v1073
        %v1163 = vmul.f32 %v1162, %v1161
        %v1164 = vmul.f32 0.5, %v1163
        %v1165 = vsub.f32 1.5, %v1164
        %v1166 = vmul.f32 %v1161, %v1165
        %vm1167 = vweird.f32 %v1073
        %vm1168 = vweird.f32 %v1161
        %vm1169 = vmor %vm1167, %vm1168
        %v1170 = vsel %vm1169, %v1161, %v1166
        %v1171 = vrsqrt.pop %v1074
        %v1172 = vmul.f32 %v1171, %v1074
        %v1173 = vmul.f32 %v1172, %v1171
        %v1174 = vmul.f32 0.5, %v1173
        %v1175 = vsub.f32 1.5, %v1174
        %v1176 = vmul.f32 %v1171, %v1175
        %vm1177 = vweird.f32 %v1074
        %vm1178 = vweird.f32 %v1171
        %vm1179 = vmor %vm1177, %vm1178
        %v1180 = vsel %vm1179, %v1171, %v1176
        %v1181 = vrsqrt.pop %v1075
        %v1182 = vmul.f32 %v1181, %v1075
        %v1183 = vmul.f32 %v1182, %v1181
        %v1184 = vmul.f32 0.5, %v1183
        %v1185 = vsub.f32 1.5, %v1184
        %v1186 = vmul.f32 %v1181, %v1185
        %vm1187 = vweird.f32 %v1075
        %vm1188 = vweird.f32 %v1181
        %vm1189 = vmor %vm1187, %vm1188
        %v1190 = vsel %vm1189, %v1181, %v1186
        %v1191 = vrsqrt.pop %v1076
        %v1192 = vmul.f32 %v1191, %v1076
        %v1193 = vmul.f32 %v1192, %v1191
        %v1194 = vmul.f32 0.5, %v1193
        %v1195 = vsub.f32 1.5, %v1194
        %v1196 = vmul.f32 %v1191, %v1195
        %vm1197 = vweird.f32 %v1076
        %vm1198 = vweird.f32 %v1191
        %vm1199 = vmor %vm1197, %vm1198
        %v1200 = vsel %vm1199, %v1191, %v1196
        %v1201 = vrsqrt.pop %v1077
        %v1202 = vmul.f32 %v1201, %v1077
        %v1203 = vmul.f32 %v1202, %v1201
        %v1204 = vmul.f32 0.5, %v1203
        %v1205 = vsub.f32 1.5, %v1204
        %v1206 = vmul.f32 %v1201, %v1205
        %vm1207 = vweird.f32 %v1077
        %vm1208 = vweird.f32 %v1201
        %vm1209 = vmor %vm1207, %vm1208
        %v1210 = vsel %vm1209, %v1201, %v1206
        %v1211 = vrsqrt.pop %v1078
        %v1212 = vmul.f32 %v1211, %v1078
        %v1213 = vmul.f32 %v1212, %v1211
        %v1214 = vmul.f32 0.5, %v1213
        %v1215 = vsub.f32 1.5, %v1214
        %v1216 = vmul.f32 %v1211, %v1215
        %vm1217 = vweird.f32 %v1078
        %vm1218 = vweird.f32 %v1211
        %vm1219 = vmor %vm1217, %vm1218
        %v1220 = vsel %vm1219, %v1211, %v1216
        %v1221 = vrsqrt.pop %v1079
        %v1222 = vmul.f32 %v1221, %v1079
        %v1223 = vmul.f32 %v1222, %v1221
        %v1224 = vmul.f32 0.5, %v1223
        %v1225 = vsub.f32 1.5, %v1224
        %v1226 = vmul.f32 %v1221, %v1225
        %vm1227 = vweird.f32 %v1079
        %vm1228 = vweird.f32 %v1221
        %vm1229 = vmor %vm1227, %vm1228
        %v1230 = vsel %vm1229, %v1221, %v1226
        %v1231 = vrsqrt.pop %v1080
        %v1232 = vmul.f32 %v1231, %v1080
        %v1233 = vmul.f32 %v1232, %v1231
        %v1234 = vmul.f32 0.5, %v1233
        %v1235 = vsub.f32 1.5, %v1234
        %v1236 = vmul.f32 %v1231, %v1235
        %vm1237 = vweird.f32 %v1080
        %vm1238 = vweird.f32 %v1231
        %vm1239 = vmor %vm1237, %vm1238
        %v1240 = vsel %vm1239, %v1231, %v1236
        %v1241 = vmul.f32 %v937, %v1090
        %v1242 = vmul.f32 %v938, %v1100
        %v1243 = vmul.f32 %v939, %v1110
        %v1244 = vmul.f32 %v940, %v1120
        %v1245 = vmul.f32 %v941, %v1130
        %v1246 = vmul.f32 %v942, %v1140
        %v1247 = vmul.f32 %v943, %v1150
        %v1248 = vmul.f32 %v944, %v1160
        %v1249 = vmul.f32 %v945, %v1170
        %v1250 = vmul.f32 %v946, %v1180
        %v1251 = vmul.f32 %v947, %v1190
        %v1252 = vmul.f32 %v948, %v1200
        %v1253 = vmul.f32 %v949, %v1210
        %v1254 = vmul.f32 %v950, %v1220
        %v1255 = vmul.f32 %v951, %v1230
        %v1256 = vmul.f32 %v952, %v1240
        %v1257 = vperm.slane %v542, 0
        %v1258 = vmul.f32 %v1241, %v1257
        %v1259 = vmul.f32 %v1242, %v1257
        %v1260 = vmul.f32 %v1243, %v1257
        %v1261 = vmul.f32 %v1244, %v1257
        %v1262 = vmul.f32 %v1245, %v1257
        %v1263 = vmul.f32 %v1246, %v1257
        %v1264 = vmul.f32 %v1247, %v1257
        %v1265 = vmul.f32 %v1248, %v1257
        %v1266 = vmul.f32 %v1249, %v1257
        %v1267 = vmul.f32 %v1250, %v1257
        %v1268 = vmul.f32 %v1251, %v1257
        %v1269 = vmul.f32 %v1252, %v1257
        %v1270 = vmul.f32 %v1253, %v1257
        %v1271 = vmul.f32 %v1254, %v1257
        %v1272 = vmul.f32 %v1255, %v1257
        %v1273 = vmul.f32 %v1256, %v1257
        %v1274 = vperm.slane %v542, 1
        %v1275 = vadd.f32 %v1258, %v1274
        %v1276 = vadd.f32 %v1259, %v1274
        %v1277 = vadd.f32 %v1260, %v1274
        %v1278 = vadd.f32 %v1261, %v1274
        %v1279 = vadd.f32 %v1262, %v1274
        %v1280 = vadd.f32 %v1263, %v1274
        %v1281 = vadd.f32 %v1264, %v1274
        %v1282 = vadd.f32 %v1265, %v1274
        %v1283 = vadd.f32 %v1266, %v1274
        %v1284 = vadd.f32 %v1267, %v1274
        %v1285 = vadd.f32 %v1268, %v1274
        %v1286 = vadd.f32 %v1269, %v1274
        %v1287 = vadd.f32 %v1270, %v1274
        %v1288 = vadd.f32 %v1271, %v1274
        %v1289 = vadd.f32 %v1272, %v1274
        %v1290 = vadd.f32 %v1273, %v1274
        %v1291 = vmul.f32 %v554, 0.5
        %v1292 = vmul.f32 %v555, 0.5
        %v1293 = vmul.f32 %v556, 0.5
        %v1294 = vmul.f32 %v557, 0.5
        %v1295 = vmul.f32 %v558, 0.5
        %v1296 = vmul.f32 %v559, 0.5
        %v1297 = vmul.f32 %v560, 0.5
        %v1298 = vmul.f32 %v561, 0.5
        %v1299 = vmul.f32 %v562, 0.5
        %v1300 = vmul.f32 %v563, 0.5
        %v1301 = vmul.f32 %v564, 0.5
        %v1302 = vmul.f32 %v565, 0.5
        %v1303 = vmul.f32 %v566, 0.5
        %v1304 = vmul.f32 %v567, 0.5
        %v1305 = vmul.f32 %v568, 0.5
        %v1306 = vmul.f32 %v569, 0.5
        %v1307 = vadd.f32 %v1291, %v1275
        %v1308 = vadd.f32 %v1292, %v1276
        %v1309 = vadd.f32 %v1293, %v1277
        %v1310 = vadd.f32 %v1294, %v1278
        %v1311 = vadd.f32 %v1295, %v1279
        %v1312 = vadd.f32 %v1296, %v1280
        %v1313 = vadd.f32 %v1297, %v1281
        %v1314 = vadd.f32 %v1298, %v1282
        %v1315 = vadd.f32 %v1299, %v1283
        %v1316 = vadd.f32 %v1300, %v1284
        %v1317 = vadd.f32 %v1301, %v1285
        %v1318 = vadd.f32 %v1302, %v1286
        %v1319 = vadd.f32 %v1303, %v1287
        %v1320 = vadd.f32 %v1304, %v1288
        %v1321 = vadd.f32 %v1305, %v1289
        %v1322 = vadd.f32 %v1306, %v1290
        %1323 = vst [vmem:[%s325] sm:$0xff] %v1307
        %1324 = vst [vmem:[%s325 + $0x8] sm:$0xff] %v1308
        %1325 = vst [vmem:[%s325 + $0x10] sm:$0xff] %v1309
        %1326 = vst [vmem:[%s325 + $0x18] sm:$0xff] %v1310
        %1327 = vst [vmem:[%s325 + $0x20] sm:$0xff] %v1311
        %1328 = vst [vmem:[%s325 + $0x28] sm:$0xff] %v1312
        %1329 = vst [vmem:[%s325 + $0x30] sm:$0xff] %v1313
        %1330 = vst [vmem:[%s325 + $0x38] sm:$0xff] %v1314
        %1331 = vst [vmem:[%s325 + $0x40] sm:$0xff] %v1315
        %1332 = vst [vmem:[%s325 + $0x48] sm:$0xff] %v1316
        %1333 = vst [vmem:[%s325 + $0x50] sm:$0xff] %v1317
        %1334 = vst [vmem:[%s325 + $0x58] sm:$0xff] %v1318
        %1335 = vst [vmem:[%s325 + $0x60] sm:$0xff] %v1319
        %1336 = vst [vmem:[%s325 + $0x68] sm:$0xff] %v1320
        %1337 = vst [vmem:[%s325 + $0x70] sm:$0xff] %v1321
        %1338 = vst [vmem:[%s325 + $0x78] sm:$0xff] %v1322
        %v1339 = vld [vmem:[#allocation2] sm:$0xff]
        %v1340 = vmul.f32 %v1339, 0.5
        %v1341 = vadd.f32 %v540, %v1340
        %v1342 = vadd.f32 %v1341, %v552
        %vm1343 = vcmp.ge.f32.partialorder %v1342, 0.0
        %v1344 = vmul.f32 %v1342, 0.01
        %v1345 = vsel %vm1343, %v1342, %v1344
        %1346 = vadd.xlane.f32.xlu0 %v1345
        %v1347 = vpop.xlane.xlu0 %1346
        %v1348 = vmul.f32 %v1347, 0.03125
        %v1349 = vsub.f32 %v1345, %v1348
        %v1350 = vmul.f32 %v1349, %v1349
        %1351 = vadd.xlane.f32.xlu0 %v1350
        %v1352 = vpop.xlane.xlu0 %1351
        %v1353 = vmul.f32 %v1348, %v1348
        %v1354 = vmul.f32 %v1353, 96.0
        %v1355 = vsub.f32 %v1352, %v1354
        %v1356 = vmul.f32 %v1355, 0.03125
        %v1357 = vadd.f32 %v1356, 1e-05
        %v1358 = vrsqrt.pop %v1357
        %v1359 = vmul.f32 %v1358, %v1357
        %v1360 = vmul.f32 %v1359, %v1358
        %v1361 = vmul.f32 0.5, %v1360
        %v1362 = vsub.f32 1.5, %v1361
        %v1363 = vmul.f32 %v1358, %v1362
        %vm1364 = vweird.f32 %v1357
        %vm1365 = vweird.f32 %v1358
        %vm1366 = vmor %vm1364, %vm1365
        %v1367 = vsel %vm1366, %v1358, %v1363
        %v1368 = vmul.f32 %v1349, %v1367
        %v1369 = vperm.slane %v542, 2
        %v1370 = vmul.f32 %v1368, %v1369
        %v1371 = vperm.slane %v542, 3
        %v1372 = vadd.f32 %v1370, %v1371
        %v1373 = vld [vmem:[#allocation17] sm:$0xff]
        %v1374 = vmul.f32 %v1373, 0.5
        %v1375 = vadd.f32 %v1374, %v1372
        %1376 = vst [vmem:[%s318] sm:$0xff] %v1375
        %s1377 = sand.u32 %s173, 1
        %s1378 = scalar_lea.sflag [#allocation14], %s1377
        %s1379 = sand.u32 %s173, 1
        %s1380 = smul.addr %s1379, 8
        %s1381 = scalar_lea.vmem [#allocation13], %s1380
        %s1382 = sand.u32 %s201, 1
        %s1383 = scalar_lea.sflag [#allocation16], %s1382
        %s1384 = sand.u32 %s201, 1
        %s1385 = smul.addr %s1384, 128
        %s1386 = scalar_lea.vmem [#allocation15], %s1385
        // Predicated region
        $region41: #{residual_gated_gcn_layer.2} parent=39 // pred_check
          %p1387 = pneg %p183
        $region42: #{residual_gated_gcn_layer.2} parent=39 // pred_check_branch
          %1389 = sbr.rel (%p1387) target = $region44
        $region43: #{residual_gated_gcn_layer.2} parent=39 // pred_region
          %1391 = vsyncadd %s1378, 0
          %s1392 = smul.addr %s31, 2
          %s1393 = sadd.s32 %s32, %s1392
          %s1394 = smul.addr %s1393, 8
          %s1395 = scalar_lea.hbm %s6, %s1394
          %s1397 = sshll.u32 %s1381, 4
          %s1398 = int_to_ptr.vmem [resolvable:$true] %s1397
          %s1399 = sshll.u32 %s1395, 4
          %s1400 = int_to_ptr.hbm [resolvable:$true] %s1399
          %1402 = dma.vmem_to_hbm [thread:$0]  %s1398, 128, %s1400, %s1378
        $region44: #{residual_gated_gcn_layer.2} parent=39 // pred_fallthru
          _
        // Predicated region
        $region45: #{residual_gated_gcn_layer.2} parent=39 // pred_check
          %p1403 = pneg %p211
        $region46: #{residual_gated_gcn_layer.2} parent=39 // pred_check_branch
          %1405 = sbr.rel (%p1403) target = $region48
        $region47: #{residual_gated_gcn_layer.2} parent=39 // pred_region
          %s1406 = smul.u32 8, %s32
          %1408 = vsyncadd %s1383, 0
          %s1409 = smul.addr %s1406, 2
          %s1410 = smul.addr %s31, 32
          %s1411 = sadd.s32 %s1409, %s1410
          %s1412 = smul.addr %s1411, 8
          %s1413 = scalar_lea.hbm %s7, %s1412
          %s1414 = sshll.u32 %s1386, 4
          %s1415 = int_to_ptr.vmem [resolvable:$true] %s1414
          %s1416 = sshll.u32 %s1413, 4
          %s1417 = int_to_ptr.hbm [resolvable:$true] %s1416
          %1422 = dma.vmem_to_hbm [thread:$0]  %s1415, 2048, %s1417, %s1383, 128, 128, 8
        $region48: #{residual_gated_gcn_layer.2} parent=39 // pred_fallthru
          _
      $region40: #{residual_gated_gcn_layer.2} parent=5 // pred_fallthru
        _
      %p1423 = scmp.le.s32.totalorder 2, %s22
      // Predicated region
      $region49: #{residual_gated_gcn_layer.2} parent=5 // pred_check
        %p1424 = pneg %p1423
      $region50: #{residual_gated_gcn_layer.2} parent=5 // pred_check_branch
        %1426 = sbr.rel (%p1424) target = $region52
      $region51: #{residual_gated_gcn_layer.2} parent=5 // pred_region
        %s1427 = ssub.s32 %s22, 2
        // Predicated region
        $region53: #{residual_gated_gcn_layer.2} parent=51 // pred_check
          %p1428 = pneg %p189
        $region54: #{residual_gated_gcn_layer.2} parent=51 // pred_check_branch
          %1430 = sbr.rel (%p1428) target = $region56
        $region55: #{residual_gated_gcn_layer.2} parent=51 // pred_region
          %s1431 = sand.u32 %s174, 1
          %s1432 = scalar_lea.sflag [#allocation14], %s1431
          %s1433 = sand.u32 %s174, 1
          %s1434 = smul.addr %s1433, 8
          %s1435 = scalar_lea.vmem [#allocation13], %s1434
          %1437 = dma.done %s1432, 128
        $region56: #{residual_gated_gcn_layer.2} parent=51 // pred_fallthru
          _
        // Predicated region
        $region57: #{residual_gated_gcn_layer.2} parent=51 // pred_check
          %p1438 = pneg %p217
        $region58: #{residual_gated_gcn_layer.2} parent=51 // pred_check_branch
          %1440 = sbr.rel (%p1438) target = $region60
        $region59: #{residual_gated_gcn_layer.2} parent=51 // pred_region
          %s1441 = sand.u32 %s202, 1
          %s1442 = scalar_lea.sflag [#allocation16], %s1441
          %s1443 = sand.u32 %s202, 1
          %s1444 = smul.addr %s1443, 128
          %s1445 = scalar_lea.vmem [#allocation15], %s1444
          %1447 = dma.done %s1442, 2048
        $region60: #{residual_gated_gcn_layer.2} parent=51 // pred_fallthru
          _
      $region52: #{residual_gated_gcn_layer.2} parent=5 // pred_fallthru
        _
    $region6: #{residual_gated_gcn_layer.2} parent=1 // loop_footer
      %s26 = sadd.s32 1, %s22
    $region7: #{residual_gated_gcn_layer.2} parent=1 // loop_footer_branch
      %21 = sbr.rel target = $region3
    $region8: #{residual_gated_gcn_layer.2} parent=1 // loop_exit
      _
    %1448 = vsyncpa [#allocation14], 1
    %s1449 = scalar_lea.sflag [#allocation14], 1
    %1450 = vsyncpa %s1449, 1
    %1451 = vsyncpa [#allocation16], 1
    %s1452 = scalar_lea.sflag [#allocation16], 1
    %1453 = vsyncpa %s1452, 1

</llo_original>
